<compile_context>
chip_gen: v7x
topology: tpu7x:2x2x1
jax: 0.10.0
libtpu: 0.0.40
codegen_flags: <defaults>
</compile_context>

<pallas_src>
import jax
import jax.numpy as jnp
from jax import lax
from jax.experimental import pallas as pl
from jax.experimental.pallas import tpu as pltpu

_INV_SQRT2 = 0.7071067811865476  # 1/sqrt(2)
_LN_EPS = 1e-5                   # torch nn.LayerNorm default
_MiB = 1024 * 1024


def _round_up(x, m):
    return ((x + m - 1) // m) * m


def _vmem_capacity_bytes():
    """Physical VMEM per core; conservative fallback if the query is unavailable."""
    try:
        return int(pltpu.get_tpu_info().vmem_capacity_bytes)
    except Exception:
        return 64 * _MiB  # assume the smallest (v7x per-TC) part


def _pick_tn(H, tn):
    """Largest multiple-of-128 divisor of H that is <= tn; falls back to full H."""
    if H <= tn:
        return H
    t = (min(tn, H) // 128) * 128
    while t >= 128:
        if H % t == 0:
            return t
        t -= 128
    # TODO(synk): if H has no multiple-of-128 divisor and full-H tiles exceed
    # VMEM, pad H in the wrapper instead of keeping it resident.
    return H


# ---------------------------------------------------------------------------
# Kernels
# ---------------------------------------------------------------------------

def ffn_kernel_resident(x_ref, gamma_ref, beta_ref, w1_ref, w2_ref, o_ref):
    """1-D grid over row tiles; W1/W2 stay resident in VMEM (constant index_map)."""
    x = x_ref[...].astype(jnp.float32)
    mean = jnp.mean(x, axis=-1, keepdims=True)
    xc = x - mean
    var = jnp.mean(xc * xc, axis=-1, keepdims=True)      # centered (stable) variance
    xn = xc * lax.rsqrt(var + _LN_EPS)
    xn = (xn * gamma_ref[...].astype(jnp.float32)
          + beta_ref[...].astype(jnp.float32))

    # Linear1 (bias-free): [tm, D] x [D, H] -> f32.
    h = jnp.dot(xn.astype(w1_ref.dtype), w1_ref[...],
                preferred_element_type=jnp.float32)
    # Exact (erf) GELU, matching nn.GELU() default.
    h = 0.5 * h * (1.0 + lax.erf(h * _INV_SQRT2))
    # TODO(synk): training-mode dropout (p=0.1) not implemented; identity at inference.

    # Linear2 (bias-free): [tm, H] x [H, D] -> f32.
    y = jnp.dot(h.astype(w2_ref.dtype), w2_ref[...],
                preferred_element_type=jnp.float32)
    o_ref[...] = y.astype(o_ref.dtype)


def ffn_kernel_tiled(x_ref, gamma_ref, beta_ref, w1_ref, w2_ref, o_ref,
                     xn_ref, acc_ref):
    """Grid = (row tiles, hidden tiles). Axis 1 is the H reduction axis."""
    j = pl.program_id(1)

    # First hidden tile: LayerNorm this row tile once and cache bf16 rows.
    @pl.when(j == 0)
    def _():
        x = x_ref[...].astype(jnp.float32)
        mean = jnp.mean(x, axis=-1, keepdims=True)
        xc = x - mean
        var = jnp.mean(xc * xc, axis=-1, keepdims=True)   # centered variance
        xn = xc * lax.rsqrt(var + _LN_EPS)
        xn = (xn * gamma_ref[...].astype(jnp.float32)
              + beta_ref[...].astype(jnp.float32))
        xn_ref[...] = xn.astype(xn_ref.dtype)

    # Linear1 on this hidden tile: [tm, D] x [D, tn] -> f32.
    h = jnp.dot(xn_ref[...], w1_ref[...], preferred_element_type=jnp.float32)
    # Exact (erf) GELU.
    h = 0.5 * h * (1.0 + lax.erf(h * _INV_SQRT2))
    # TODO(synk): training-mode dropout (p=0.1) not implemented; identity at inference.

    # Linear2 partial product over this hidden tile.
    partial = jnp.dot(h.astype(w2_ref.dtype), w2_ref[...],
                      preferred_element_type=jnp.float32)

    @pl.when(j == 0)
    def _():
        acc_ref[...] = partial          # direct write: no zero-init + RMW

    @pl.when(j > 0)
    def _():
        acc_ref[...] += partial

    @pl.when(j == pl.num_programs(1) - 1)
    def _():
        o_ref[...] = acc_ref[...].astype(o_ref.dtype)


# ---------------------------------------------------------------------------
# Wrapper
# ---------------------------------------------------------------------------

def ffn_forward(x, gamma, beta, w1, w2, *, tm=None, tn=512, force_tiled=False):
    """x: [B, S, D]. gamma/beta: [D]. w1: [D, H]. w2: [H, D]. Returns [B, S, D]."""
    B, S, D = x.shape
    Dw, H = w1.shape
    assert Dw == D and w2.shape == (H, D)
    M = B * S

    vmem_cap = _vmem_capacity_bytes()
    # Never request the entire physical VMEM; leave headroom for Mosaic scratch.
    vmem_limit = int(min(vmem_cap - 8 * _MiB, 112 * _MiB))

    # Generation-aware row tile: 512 on 64-MiB parts (v7x), 1024 on 128-MiB
    # parts (v5e/v6e); v5e is already compute-bound at smaller tiles so the
    # bigger tile is harmless there.
    if tm is None:
        tm = 512 if vmem_cap <= 80 * _MiB else 1024

    # Effective row tile: multiple of 8 (sublane); prefer >= 2 row tiles so
    # both v7x TensorCores get balanced work.
    tm_eff = min(tm, _round_up(M, 8))
    if M > 8 and pl.cdiv(M, tm_eff) < 2:
        tm_eff = _round_up(pl.cdiv(M, 2), 8)
    n_row_tiles = pl.cdiv(M, tm_eff)   # no host-side pad: boundary tile masked

    out_dtype = x.dtype
    itemsize = jnp.dtype(out_dtype).itemsize

    x2 = x.reshape(M, D)
    g2 = gamma.reshape(1, D).astype(jnp.float32)
    b2 = beta.reshape(1, D).astype(jnp.float32)
    w1b = w1.astype(jnp.bfloat16)   # bf16 MXU operands, f32 accumulation
    w2b = w2.astype(jnp.bfloat16)

    # Weight-resident fast path budget: bf16 W1+W2 double-buffered, activation
    # row tiles double-buffered, plus the f32 intermediates of one row tile.
    resident_bytes = (
        2 * (2 * D * H * 2)              # W1 + W2 (bf16), double-buffered
        + 2 * tm_eff * D * itemsize * 2  # x tile + out tile, double-buffered
        + tm_eff * H * 4                 # h intermediate (f32)
        + 2 * tm_eff * D * 4             # xn / y f32 temporaries
    )
    use_resident = (not force_tiled) and resident_bytes <= int(0.75 * vmem_limit)

    if use_resident:
        out = pl.pallas_call(
            ffn_kernel_resident,
            out_shape=jax.ShapeDtypeStruct((M, D), out_dtype),
            grid_spec=pltpu.PrefetchScalarGridSpec(
                num_scalar_prefetch=0,
                grid=(n_row_tiles,),
                in_specs=[
                    pl.BlockSpec((tm_eff, D), lambda i: (i, 0)),  # x rows
                    pl.BlockSpec((1, D), lambda i: (0, 0)),       # gamma
                    pl.BlockSpec((1, D), lambda i: (0, 0)),       # beta
                    pl.BlockSpec((D, H), lambda i: (0, 0)),       # W1 (resident)
                    pl.BlockSpec((H, D), lambda i: (0, 0)),       # W2 (resident)
                ],
                out_specs=pl.BlockSpec((tm_eff, D), lambda i: (i, 0)),
            ),
            compiler_params=pltpu.CompilerParams(
                dimension_semantics=("parallel",),
                vmem_limit_bytes=vmem_limit,
            ),
        )(x2, g2, b2, w1b, w2b)
        return out.reshape(B, S, D)

    # Hidden-dim-tiled reduction path.
    tn_eff = _pick_tn(H, tn)
    n_h_tiles = H // tn_eff

    out = pl.pallas_call(
        ffn_kernel_tiled,
        out_shape=jax.ShapeDtypeStruct((M, D), out_dtype),
        grid_spec=pltpu.PrefetchScalarGridSpec(
            num_scalar_prefetch=0,
            grid=(n_row_tiles, n_h_tiles),
            in_specs=[
                pl.BlockSpec((tm_eff, D), lambda i, j: (i, 0)),   # x rows
                pl.BlockSpec((1, D), lambda i, j: (0, 0)),        # gamma
                pl.BlockSpec((1, D), lambda i, j: (0, 0)),        # beta
                pl.BlockSpec((D, tn_eff), lambda i, j: (0, j)),   # W1 column tile
                pl.BlockSpec((tn_eff, D), lambda i, j: (j, 0)),   # W2 row tile
            ],
            out_specs=pl.BlockSpec((tm_eff, D), lambda i, j: (i, 0)),
            scratch_shapes=[
                pltpu.VMEM((tm_eff, D), jnp.bfloat16),   # cached LayerNorm rows
                pltpu.VMEM((tm_eff, D), jnp.float32),    # output accumulator
            ],
        ),
        compiler_params=pltpu.CompilerParams(
            dimension_semantics=("parallel", "arbitrary"),
            vmem_limit_bytes=vmem_limit,
        ),
    )(x2, g2, b2, w1b, w2b)
    return out.reshape(B, S, D)


# ---------------------------------------------------------------------------
# Pure-JAX reference (mirrors the kernel's bf16-matmul / f32-accumulate path)
# ---------------------------------------------------------------------------

def ffn_reference(x, gamma, beta, w1, w2):
    xf = x.astype(jnp.float32)
    mean = jnp.mean(xf, axis=-1, keepdims=True)
    xc = xf - mean
    var = jnp.mean(xc * xc, axis=-1, keepdims=True)
    xn = xc * lax.rsqrt(var + _LN_EPS)
    xn = xn * gamma.astype(jnp.float32) + beta.astype(jnp.float32)
    h = jnp.dot(xn.astype(jnp.bfloat16), w1.astype(jnp.bfloat16),
                preferred_element_type=jnp.float32)
    h = 0.5 * h * (1.0 + lax.erf(h * _INV_SQRT2))
    y = jnp.dot(h.astype(jnp.bfloat16), w2.astype(jnp.bfloat16),
                preferred_element_type=jnp.float32)
    return y.astype(x.dtype)


if __name__ == "__main__":
    # Small shapes consistent with the module: hidden H = 4 * embedding D.
    B, S, D, H = 2, 8, 256, 1024

    key = jax.random.PRNGKey(0)
    kx, kg, kb, k1, k2 = jax.random.split(key, 5)

    x = jax.random.normal(kx, (B, S, D), dtype=jnp.float32)
    gamma = 1.0 + 0.1 * jax.random.normal(kg, (D,), dtype=jnp.float32)
    beta = 0.1 * jax.random.normal(kb, (D,), dtype=jnp.float32)
    w1 = jax.random.normal(k1, (D, H), dtype=jnp.float32) * (1.0 / jnp.sqrt(D))
    w2 = jax.random.normal(k2, (H, D), dtype=jnp.float32) * (1.0 / jnp.sqrt(H))

    y_ref = ffn_reference(x, gamma, beta, w1, w2)

    # Weight-resident fast path (default for these small shapes).
    y_res = ffn_forward(x, gamma, beta, w1, w2)
    jax.block_until_ready(y_res)

    # Hidden-dim-tiled reduction path (exercises the accumulator / pl.when logic).
    y_til = ffn_forward(x, gamma, beta, w1, w2, tn=128, force_tiled=True)
    jax.block_until_ready(y_til)

    assert y_res.shape == (B, S, D) and y_til.shape == (B, S, D)
    assert jnp.allclose(y_res, y_ref, atol=1e-2, rtol=1e-2), "resident path mismatch"
    assert jnp.allclose(y_til, y_ref, atol=1e-2, rtol=1e-2), "tiled path mismatch"

    print("KERNEL_OK")
</pallas_src>

<mosaic_0001>
module attributes {stable_mosaic.version = 11 : i64} {
  func.func @ffn_kernel_resident(%arg0: i32, %arg1: memref<8x256xf32, #tpu.memory_space<vmem>>, %arg2: memref<1x256xf32, #tpu.memory_space<vmem>>, %arg3: memref<1x256xf32, #tpu.memory_space<vmem>>, %arg4: memref<256x1024xbf16, #tpu.memory_space<vmem>>, %arg5: memref<1024x256xbf16, #tpu.memory_space<vmem>>, %arg6: memref<8x256xf32, #tpu.memory_space<vmem>>) attributes {dimension_semantics = [#tpu.dimension_semantics<parallel>], iteration_bounds = array<i64: 2>, scalar_prefetch = 0 : i64, scratch_operands = 0 : i64, tpu.core_type = #tpu.core_type<tc>, window_params = [{transform_indices = @transform_0, window_bounds = array<i64: 8, 256>}, {pipeline_mode = #tpu.pipeline_mode<synchronous>, transform_indices = @transform_1, window_bounds = array<i64: 1, 256>}, {pipeline_mode = #tpu.pipeline_mode<synchronous>, transform_indices = @transform_2, window_bounds = array<i64: 1, 256>}, {pipeline_mode = #tpu.pipeline_mode<synchronous>, transform_indices = @transform_3, window_bounds = array<i64: 256, 1024>}, {pipeline_mode = #tpu.pipeline_mode<synchronous>, transform_indices = @transform_4, window_bounds = array<i64: 1024, 256>}, {transform_indices = @transform_5, window_bounds = array<i64: 8, 256>}]} {
    %c0 = arith.constant 0 : index
    %c0_0 = arith.constant 0 : index
    %0 = vector.load %arg1[%c0, %c0_0] : memref<8x256xf32, #tpu.memory_space<vmem>>, vector<8x256xf32>
    %cst = arith.constant dense<0.000000e+00> : vector<8xf32>
    %1 = vector.multi_reduction <add>, %0, %cst [1] : vector<8x256xf32> to vector<8xf32>
    %2 = vector.shape_cast %1 : vector<8xf32> to vector<8x1xf32>
    %cst_1 = arith.constant 2.560000e+02 : f32
    %3 = vector.broadcast %cst_1 : f32 to vector<8x1xf32>
    %4 = arith.divf %2, %3 : vector<8x1xf32>
    %5 = vector.broadcast %4 : vector<8x1xf32> to vector<8x256xf32>
    %6 = arith.subf %0, %5 : vector<8x256xf32>
    %7 = arith.mulf %6, %6 : vector<8x256xf32>
    %cst_2 = arith.constant dense<0.000000e+00> : vector<8xf32>
    %8 = vector.multi_reduction <add>, %7, %cst_2 [1] : vector<8x256xf32> to vector<8xf32>
    %9 = vector.shape_cast %8 : vector<8xf32> to vector<8x1xf32>
    %cst_3 = arith.constant 2.560000e+02 : f32
    %10 = vector.broadcast %cst_3 : f32 to vector<8x1xf32>
    %11 = arith.divf %9, %10 : vector<8x1xf32>
    %cst_4 = arith.constant 9.99999974E-6 : f32
    %12 = vector.broadcast %cst_4 : f32 to vector<8x1xf32>
    %13 = arith.addf %11, %12 : vector<8x1xf32>
    %14 = math.rsqrt %13 : vector<8x1xf32>
    %15 = vector.broadcast %14 : vector<8x1xf32> to vector<8x256xf32>
    %16 = arith.mulf %6, %15 : vector<8x256xf32>
    %c0_5 = arith.constant 0 : index
    %c0_6 = arith.constant 0 : index
    %17 = vector.load %arg2[%c0_5, %c0_6] : memref<1x256xf32, #tpu.memory_space<vmem>>, vector<1x256xf32>
    %18 = vector.broadcast %17 : vector<1x256xf32> to vector<8x256xf32>
    %19 = arith.mulf %16, %18 : vector<8x256xf32>
    %c0_7 = arith.constant 0 : index
    %c0_8 = arith.constant 0 : index
    %20 = vector.load %arg3[%c0_7, %c0_8] : memref<1x256xf32, #tpu.memory_space<vmem>>, vector<1x256xf32>
    %21 = vector.broadcast %20 : vector<1x256xf32> to vector<8x256xf32>
    %22 = arith.addf %19, %21 : vector<8x256xf32>
    %23 = arith.truncf %22 : vector<8x256xf32> to vector<8x256xbf16>
    %c0_9 = arith.constant 0 : index
    %c0_10 = arith.constant 0 : index
    %24 = vector.load %arg4[%c0_9, %c0_10] : memref<256x1024xbf16, #tpu.memory_space<vmem>>, vector<256x1024xbf16>
    %cst_11 = arith.constant dense<0.000000e+00> : vector<8x1024xf32>
    %25 = tpu.matmul %23, %24, %cst_11 {dimension_numbers = #tpu.dot_dimension_numbers<[1], [0], [0], [1], [0, 0, 1, 1], [], []>} : vector<8x256xbf16>, vector<256x1024xbf16>, vector<8x1024xf32> -> vector<8x1024xf32>
    %cst_12 = arith.constant 5.000000e-01 : f32
    %26 = vector.broadcast %cst_12 : f32 to vector<8x1024xf32>
    %27 = arith.mulf %26, %25 : vector<8x1024xf32>
    %cst_13 = arith.constant 0.707106769 : f32
    %28 = vector.broadcast %cst_13 : f32 to vector<8x1024xf32>
    %29 = arith.mulf %25, %28 : vector<8x1024xf32>
    %30 = math.erf %29 : vector<8x1024xf32>
    %cst_14 = arith.constant 1.000000e+00 : f32
    %31 = vector.broadcast %cst_14 : f32 to vector<8x1024xf32>
    %32 = arith.addf %31, %30 : vector<8x1024xf32>
    %33 = arith.mulf %27, %32 : vector<8x1024xf32>
    %34 = arith.truncf %33 : vector<8x1024xf32> to vector<8x1024xbf16>
    %c0_15 = arith.constant 0 : index
    %c0_16 = arith.constant 0 : index
    %35 = vector.load %arg5[%c0_15, %c0_16] : memref<1024x256xbf16, #tpu.memory_space<vmem>>, vector<1024x256xbf16>
    %cst_17 = arith.constant dense<0.000000e+00> : vector<8x256xf32>
    %36 = tpu.matmul %34, %35, %cst_17 {dimension_numbers = #tpu.dot_dimension_numbers<[1], [0], [0], [1], [0, 0, 1, 1], [], []>} : vector<8x1024xbf16>, vector<1024x256xbf16>, vector<8x256xf32> -> vector<8x256xf32>
    %c0_18 = arith.constant 0 : index
    %c0_19 = arith.constant 0 : index
    %37 = vector.load %arg6[%c0_18, %c0_19] : memref<8x256xf32, #tpu.memory_space<vmem>>, vector<8x256xf32>
    tpu.vector_store %arg6[%c0_18, %c0_19], %36 {strides = array<i32>} : memref<8x256xf32, #tpu.memory_space<vmem>>, vector<8x256xf32>,
    return
  }
  func.func @transform_0(%arg0: i32) -> (i32, i32) {
    %c0_i32 = arith.constant 0 : i32
    %c0_i32_0 = arith.constant 0 : i32
    return %arg0, %c0_i32 : i32, i32
  }
  func.func @transform_1(%arg0: i32) -> (i32, i32) {
    %c0_i32 = arith.constant 0 : i32
    %c0_i32_0 = arith.constant 0 : i32
    %c0_i32_1 = arith.constant 0 : i32
    return %c0_i32, %c0_i32_0 : i32, i32
  }
  func.func @transform_2(%arg0: i32) -> (i32, i32) {
    %c0_i32 = arith.constant 0 : i32
    %c0_i32_0 = arith.constant 0 : i32
    %c0_i32_1 = arith.constant 0 : i32
    return %c0_i32, %c0_i32_0 : i32, i32
  }
  func.func @transform_3(%arg0: i32) -> (i32, i32) {
    %c0_i32 = arith.constant 0 : i32
    %c0_i32_0 = arith.constant 0 : i32
    %c0_i32_1 = arith.constant 0 : i32
    return %c0_i32, %c0_i32_0 : i32, i32
  }
  func.func @transform_4(%arg0: i32) -> (i32, i32) {
    %c0_i32 = arith.constant 0 : i32
    %c0_i32_0 = arith.constant 0 : i32
    %c0_i32_1 = arith.constant 0 : i32
    return %c0_i32, %c0_i32_0 : i32, i32
  }
  func.func @transform_5(%arg0: i32) -> (i32, i32) {
    %c0_i32 = arith.constant 0 : i32
    %c0_i32_0 = arith.constant 0 : i32
    return %arg0, %c0_i32 : i32, i32
  }
}

</mosaic_0001>

<llo_original>
// kernel: tpu_custom_call.1
$region0: #{tpu_custom_call.1}
  #allocation0 [shape = 'u32[]', space=smem, size = 0x4, offset = 0x4, fixed_abs, tag = 'smem constant byte address 0x4 - core index']
  #allocation1 [shape = 'u32[144,128]{1,0:T(1,128)}', space=vmem, size = 0x12000, scoped, tag = 'internal scratch']
  %s0 = inlined_call_operand.hbm [shape: f32[16,256], index: 0, kind: input, shape index: {}]
  %s1 = inlined_call_operand.vmem [shape: f32[1,256], index: 1, kind: input, shape index: {}]
  %s2 = inlined_call_operand.vmem [shape: f32[1,256], index: 2, kind: input, shape index: {}]
  %s3 = inlined_call_operand.hbm [shape: bf16[256,1024], index: 3, kind: input, shape index: {}]
  %s4 = inlined_call_operand.hbm [shape: bf16[1024,256], index: 4, kind: input, shape index: {}]
  %s5 = inlined_call_operand.hbm [shape: f32[16,256], index: 5, kind: output, shape index: {}]
  %s6 = sld [smem:[#allocation0]]
  $region65: #{tpu_custom_call.1} parent=0
    _
  %s8 = ssub.s32 1, %s6
  %s9 = scalar_select 0, %s8, %s6
  $region1: #{tpu_custom_call.1} parent=0
    #allocation2 [shape = 'u8[16384]{0}', space=vmem, size = 0x4000, scoped, tag = 'input window, operand 0']
    #allocation3 [shape = 's32[2]{0}', space=sflag, size = 0x8, scoped, tag = 'scoped memory for tpu_custom_call.1']
    #allocation4 [shape = 's32[2]{0}', space=sflag, size = 0x8, scoped, tag = 'scoped memory for tpu_custom_call.1']
    #allocation5 [shape = 'u8[524288]{0}', space=vmem, size = 0x80000, scoped, tag = 'input window, operand 3, single buffered']
    #allocation6 [shape = 's32[1]{0}', space=sflag, size = 0x4, scoped, tag = 'scoped memory for tpu_custom_call.1']
    #allocation7 [shape = 'u8[524288]{0}', space=vmem, size = 0x80000, scoped, tag = 'input window, operand 4, single buffered']
    #allocation8 [shape = 'u8[16384]{0}', space=vmem, size = 0x4000, scoped, tag = 'output window, operand 0']
    %10 = vsyncpa [#allocation3], 0
    %s11 = scalar_lea.sflag [#allocation3], 1
    %12 = vsyncpa %s11, 0
    %13 = vsyncpa [#allocation6], 0
    %14 = vsyncpa [#allocation4], 0
    %s15 = scalar_lea.sflag [#allocation4], 1
    %16 = vsyncpa %s15, 0
    loop: start=0, step=1, limit=4
    $region2: #{tpu_custom_call.1} parent=1 // loop_pre_header
      _
    $region3: #{tpu_custom_call.1} parent=1 // loop_header
      %s18 = sphi 0, %s22
      %p19 = scmp.ge.s32.totalorder %s18, 4
      %s28 = sphi 0, %s30
      %s31 = sphi 0, %s28
      %s32 = sphi 0, %s31
      %s48 = sphi 0, %s32
      %s52 = sphi 0, %s52
      %s54 = sphi 0, %s52
      %s55 = sphi 0, %s54
      %s69 = sphi 0, %s55
      %s73 = sphi 0, %s73
      %s75 = sphi 0, %s73
      %s76 = sphi 0, %s75
      %s90 = sphi 0, %s76
      %s94 = sphi 0, %s94
      %s96 = sphi 0, %s94
      %s97 = sphi 0, %s96
      %s111 = sphi 0, %s97
      %s115 = sphi 0, %s115
      %s117 = sphi 0, %s115
      %s118 = sphi 0, %s117
      %s132 = sphi 0, %s118
      %s138 = sphi 0, %s140
      %s141 = sphi 0, %s138
      %s142 = sphi 0, %s141
      %s158 = sphi 0, %s142
    $region4: #{tpu_custom_call.1} parent=1 // loop_header_branch
      %21 = sbr.rel (%p19) target = $region8
    $region5: #{tpu_custom_call.1} parent=1 // loop_body
      %s23 = ssub.s32 %s18, 1
      %s24 = ssub.s32 %s18, 2
      %s25 = sadd.s32 %s18, 1
      %s26 = ssub.s32 %s18, %s25
      %p27 = scmp.eq.s32.totalorder %s26, 0
      %s29 = sadd.s32 %s28, 1
      %s30 = scalar_select %p27, %s28, %s29
      %p33 = pneg %p27
      %p34 = scmp.eq.s32.totalorder %s18, 1
      %p35 = por %p33, %p34
      %p36 = scmp.ne.s32.totalorder %s28, %s31
      %p37 = scmp.eq.s32.totalorder %s18, 0
      %p38 = por %p36, %p37
      %p39 = scmp.ne.s32.totalorder %s28, %s31
      %p40 = scmp.eq.s32.totalorder %s23, 1
      %p41 = por %p39, %p40
      %p42 = scmp.ne.s32.totalorder %s31, %s32
      %p43 = scmp.eq.s32.totalorder %s23, 0
      %p44 = por %p42, %p43
      %p45 = scmp.ne.s32.totalorder %s31, %s32
      %p46 = scmp.eq.s32.totalorder %s24, 1
      %p47 = por %p45, %p46
      %p49 = scmp.ne.s32.totalorder %s32, %s48
      %p50 = scmp.eq.s32.totalorder %s24, 0
      %p51 = por %p49, %p50
      %s53 = sadd.s32 %s52, 1
      %p56 = scmp.eq.s32.totalorder %s18, 1
      %p57 = scmp.ne.s32.totalorder %s52, %s54
      %p58 = scmp.eq.s32.totalorder %s18, 0
      %p59 = por %p57, %p58
      %p60 = scmp.ne.s32.totalorder %s52, %s54
      %p61 = scmp.eq.s32.totalorder %s23, 1
      %p62 = por %p60, %p61
      %p63 = scmp.ne.s32.totalorder %s54, %s55
      %p64 = scmp.eq.s32.totalorder %s23, 0
      %p65 = por %p63, %p64
      %p66 = scmp.ne.s32.totalorder %s54, %s55
      %p67 = scmp.eq.s32.totalorder %s24, 1
      %p68 = por %p66, %p67
      %p70 = scmp.ne.s32.totalorder %s55, %s69
      %p71 = scmp.eq.s32.totalorder %s24, 0
      %p72 = por %p70, %p71
      %s74 = sadd.s32 %s73, 1
      %p77 = scmp.eq.s32.totalorder %s18, 1
      %p78 = scmp.ne.s32.totalorder %s73, %s75
      %p79 = scmp.eq.s32.totalorder %s18, 0
      %p80 = por %p78, %p79
      %p81 = scmp.ne.s32.totalorder %s73, %s75
      %p82 = scmp.eq.s32.totalorder %s23, 1
      %p83 = por %p81, %p82
      %p84 = scmp.ne.s32.totalorder %s75, %s76
      %p85 = scmp.eq.s32.totalorder %s23, 0
      %p86 = por %p84, %p85
      %p87 = scmp.ne.s32.totalorder %s75, %s76
      %p88 = scmp.eq.s32.totalorder %s24, 1
      %p89 = por %p87, %p88
      %p91 = scmp.ne.s32.totalorder %s76, %s90
      %p92 = scmp.eq.s32.totalorder %s24, 0
      %p93 = por %p91, %p92
      %s95 = sadd.s32 %s94, 1
      %p98 = scmp.eq.s32.totalorder %s18, 1
      %p99 = scmp.ne.s32.totalorder %s94, %s96
      %p100 = scmp.eq.s32.totalorder %s18, 0
      %p101 = por %p99, %p100
      %p102 = scmp.ne.s32.totalorder %s94, %s96
      %p103 = scmp.eq.s32.totalorder %s23, 1
      %p104 = por %p102, %p103
      %p105 = scmp.ne.s32.totalorder %s96, %s97
      %p106 = scmp.eq.s32.totalorder %s23, 0
      %p107 = por %p105, %p106
      %p108 = scmp.ne.s32.totalorder %s96, %s97
      %p109 = scmp.eq.s32.totalorder %s24, 1
      %p110 = por %p108, %p109
      %p112 = scmp.ne.s32.totalorder %s97, %s111
      %p113 = scmp.eq.s32.totalorder %s24, 0
      %p114 = por %p112, %p113
      %s116 = sadd.s32 %s115, 1
      %p119 = scmp.eq.s32.totalorder %s18, 1
      %p120 = scmp.ne.s32.totalorder %s115, %s117
      %p121 = scmp.eq.s32.totalorder %s18, 0
      %p122 = por %p120, %p121
      %p123 = scmp.ne.s32.totalorder %s115, %s117
      %p124 = scmp.eq.s32.totalorder %s23, 1
      %p125 = por %p123, %p124
      %p126 = scmp.ne.s32.totalorder %s117, %s118
      %p127 = scmp.eq.s32.totalorder %s23, 0
      %p128 = por %p126, %p127
      %p129 = scmp.ne.s32.totalorder %s117, %s118
      %p130 = scmp.eq.s32.totalorder %s24, 1
      %p131 = por %p129, %p130
      %p133 = scmp.ne.s32.totalorder %s118, %s132
      %p134 = scmp.eq.s32.totalorder %s24, 0
      %p135 = por %p133, %p134
      %s136 = ssub.s32 %s18, %s25
      %p137 = scmp.eq.s32.totalorder %s136, 0
      %s139 = sadd.s32 %s138, 1
      %s140 = scalar_select %p137, %s138, %s139
      %p143 = pneg %p137
      %p144 = scmp.eq.s32.totalorder %s18, 1
      %p145 = por %p143, %p144
      %p146 = scmp.ne.s32.totalorder %s138, %s141
      %p147 = scmp.eq.s32.totalorder %s18, 0
      %p148 = por %p146, %p147
      %p149 = scmp.ne.s32.totalorder %s138, %s141
      %p150 = scmp.eq.s32.totalorder %s23, 1
      %p151 = por %p149, %p150
      %p152 = scmp.ne.s32.totalorder %s141, %s142
      %p153 = scmp.eq.s32.totalorder %s23, 0
      %p154 = por %p152, %p153
      %p155 = scmp.ne.s32.totalorder %s141, %s142
      %p156 = scmp.eq.s32.totalorder %s24, 1
      %p157 = por %p155, %p156
      %p159 = scmp.ne.s32.totalorder %s142, %s158
      %p160 = scmp.eq.s32.totalorder %s24, 0
      %p161 = por %p159, %p160
      %p162 = scmp.le.s32.totalorder 1, %s18
      %p163 = scmp.lt.s32.totalorder %s18, 3
      %p164 = pnand %p162, %p163
      %p165 = pneg %p164
      // Predicated region
      $region9: #{tpu_custom_call.1} parent=5 // pred_check
        _
      $region10: #{tpu_custom_call.1} parent=5 // pred_check_branch
        %167 = sbr.rel (%p164) target = $region12
      $region11: #{tpu_custom_call.1} parent=5 // pred_region
        %s168 = ssub.s32 %s18, 1
        // Predicated region
        $region13: #{tpu_custom_call.1} parent=11 // pred_check
          %p169 = pneg %p65
        $region14: #{tpu_custom_call.1} parent=11 // pred_check_branch
          %171 = sbr.rel (%p169) target = $region16
        $region15: #{tpu_custom_call.1} parent=11 // pred_region
          _
        $region16: #{tpu_custom_call.1} parent=11 // pred_fallthru
          _
        // Predicated region
        $region17: #{tpu_custom_call.1} parent=11 // pred_check
          %p172 = pneg %p86
        $region18: #{tpu_custom_call.1} parent=11 // pred_check_branch
          %174 = sbr.rel (%p172) target = $region20
        $region19: #{tpu_custom_call.1} parent=11 // pred_region
          _
        $region20: #{tpu_custom_call.1} parent=11 // pred_fallthru
          _
        // Predicated region
        $region21: #{tpu_custom_call.1} parent=11 // pred_check
          %p175 = pneg %p107
        $region22: #{tpu_custom_call.1} parent=11 // pred_check_branch
          %177 = sbr.rel (%p175) target = $region24
        $region23: #{tpu_custom_call.1} parent=11 // pred_region
          %s179 = ssub.s32 16384, 16384
          %180 = vsyncadd [#allocation6], %s179
          %s181 = sshll.u32 [#allocation5], 4
          %s182 = int_to_ptr.vmem [resolvable:$true] %s181
          %187 = dma.hbm_to_vmem [thread:$0]  %s3, 16384, %s182, [#allocation6], 512, 512, 32
        $region24: #{tpu_custom_call.1} parent=11 // pred_fallthru
          _
        // Predicated region
        $region25: #{tpu_custom_call.1} parent=11 // pred_check
          %p188 = pneg %p128
        $region26: #{tpu_custom_call.1} parent=11 // pred_check_branch
          %190 = sbr.rel (%p188) target = $region28
        $region27: #{tpu_custom_call.1} parent=11 // pred_region
          %s192 = ssub.s32 16384, 16384
          %193 = vsyncadd [#allocation6], %s192
          %s194 = sshll.u32 [#allocation7], 4
          %s195 = int_to_ptr.vmem [resolvable:$true] %s194
          %200 = dma.hbm_to_vmem [thread:$0]  %s4, 16384, %s195, [#allocation6], 128, 128, 8
        $region28: #{tpu_custom_call.1} parent=11 // pred_fallthru
          _
      $region12: #{tpu_custom_call.1} parent=5 // pred_fallthru
        _
      %p201 = scmp.lt.s32.totalorder %s18, 2
      // Predicated region
      $region29: #{tpu_custom_call.1} parent=5 // pred_check
        %p202 = pneg %p201
      $region30: #{tpu_custom_call.1} parent=5 // pred_check_branch
        %204 = sbr.rel (%p202) target = $region32
      $region31: #{tpu_custom_call.1} parent=5 // pred_region
        // Predicated region
        $region33: #{tpu_custom_call.1} parent=31 // pred_check
          %p205 = pneg %p38
        $region34: #{tpu_custom_call.1} parent=31 // pred_check_branch
          %207 = sbr.rel (%p205) target = $region36
        $region35: #{tpu_custom_call.1} parent=31 // pred_region
          %s208 = sand.u32 %s28, 1
          %s209 = scalar_lea.sflag [#allocation3], %s208
          %s210 = sand.u32 %s28, 1
          %s211 = smul.addr %s210, 16
          %s212 = scalar_lea.vmem [#allocation2], %s211
          %s214 = ssub.s32 256, 256
          %215 = vsyncadd %s209, %s214
          %s216 = smul.addr %s18, 2
          %s217 = smul.addr %s216, 128
          %s218 = scalar_lea.hbm %s0, %s217
          %s220 = sshll.u32 %s212, 4
          %s221 = int_to_ptr.vmem [resolvable:$true] %s220
          %223 = dma.hbm_to_vmem [thread:$0]  %s218, 256, %s221, %s209
        $region36: #{tpu_custom_call.1} parent=31 // pred_fallthru
          _
      $region32: #{tpu_custom_call.1} parent=5 // pred_fallthru
        _
      %p224 = scmp.le.s32.totalorder 1, %s18
      %p225 = scmp.lt.s32.totalorder %s18, 3
      %p226 = pnand %p224, %p225
      %p227 = pneg %p226
      // Predicated region
      $region37: #{tpu_custom_call.1} parent=5 // pred_check
        _
      $region38: #{tpu_custom_call.1} parent=5 // pred_check_branch
        %229 = sbr.rel (%p226) target = $region40
      $region39: #{tpu_custom_call.1} parent=5 // pred_region
        %s230 = ssub.s32 %s18, 1
        %s231 = sand.u32 %s31, 1
        %s232 = scalar_lea.sflag [#allocation3], %s231
        %s233 = sand.u32 %s31, 1
        %s234 = smul.addr %s233, 16
        %s235 = scalar_lea.vmem [#allocation2], %s234
        // Predicated region
        $region41: #{tpu_custom_call.1} parent=39 // pred_check
          %p236 = pneg %p44
        $region42: #{tpu_custom_call.1} parent=39 // pred_check_branch
          %238 = sbr.rel (%p236) target = $region44
        $region43: #{tpu_custom_call.1} parent=39 // pred_region
          %239 = dma.done %s232, 256
        $region44: #{tpu_custom_call.1} parent=39 // pred_fallthru
          _
        // Predicated region
        $region45: #{tpu_custom_call.1} parent=39 // pred_check
          %p240 = pneg %p107
        $region46: #{tpu_custom_call.1} parent=39 // pred_check_branch
          %242 = sbr.rel (%p240) target = $region48
        $region47: #{tpu_custom_call.1} parent=39 // pred_region
          %243 = dma.done [#allocation6], 16384
        $region48: #{tpu_custom_call.1} parent=39 // pred_fallthru
          _
        // Predicated region
        $region49: #{tpu_custom_call.1} parent=39 // pred_check
          %p244 = pneg %p128
        $region50: #{tpu_custom_call.1} parent=39 // pred_check_branch
          %246 = sbr.rel (%p244) target = $region52
        $region51: #{tpu_custom_call.1} parent=39 // pred_region
          %247 = dma.done [#allocation6], 16384
        $region52: #{tpu_custom_call.1} parent=39 // pred_fallthru
          _
        %s248 = sand.u32 %s31, 1
        %s249 = scalar_lea.sflag [#allocation3], %s248
        %s250 = sand.u32 %s31, 1
        %s251 = smul.addr %s250, 16
        %s252 = scalar_lea.vmem [#allocation2], %s251
        %p253 = pneg %p44
        %p254 = pneg %p41
        %p255 = pneg %p65
        %p256 = pneg %p62
        %p257 = pneg %p86
        %p258 = pneg %p83
        %p259 = pneg %p107
        %p260 = pneg %p104
        %p261 = pneg %p128
        %p262 = pneg %p125
        %p263 = pneg %p154
        %p264 = pneg %p151
        %s265 = sand.u32 %s141, 1
        %s266 = scalar_lea.sflag [#allocation4], %s265
        %s267 = sand.u32 %s141, 1
        %s268 = smul.addr %s267, 16
        %s269 = scalar_lea.vmem [#allocation8], %s268
        %v270 = vld [vmem:[%s235] sm:$0xff]
        %v271 = vld [vmem:[%s235 + $0x8] sm:$0xff]
        %v272 = vadd.f32 %v270, %v271
        %273 = vadd.xlane.f32.xlu0 %v272
        %v274 = vpop.xlane.xlu0 %273
        %v275 = vrcp.pop 256.0
        %v276 = vmul.f32 %v274, %v275
        %v277 = vsub.f32 %v270, %v276
        %v278 = vsub.f32 %v271, %v276
        %v279 = vmul.f32 %v277, %v277
        %v280 = vmul.f32 %v278, %v278
        %v281 = vadd.f32 %v279, %v280
        %282 = vadd.xlane.f32.xlu0 %v281
        %v283 = vpop.xlane.xlu0 %282
        %v284 = vmul.f32 %v283, %v275
        %v285 = vadd.f32 %v284, 1e-05
        %v286 = vrsqrt.pop %v285
        %v287 = vmul.f32 %v277, %v286
        %v288 = vmul.f32 %v278, %v286
        %v289 = vld [vmem:[%s1] sm:$0x3]
        %v291 = vlaneseq
        %v292 = vshrl.u32 %v291, 7
        %v293 = vsub.s32 0, %v292
        %v294 = vrot.slane %v289, %v293
        %v295 = vlaneseq
        %v296 = vshrl.u32 %v295, 7
        %v297 = vsub.s32 1, %v296
        %v298 = vrot.slane %v289, %v297
        %v301 = vmul.f32 %v287, %v294
        %v302 = vmul.f32 %v288, %v298
        %v303 = vld [vmem:[%s2] sm:$0x3]
        %v305 = vlaneseq
        %v306 = vshrl.u32 %v305, 7
        %v307 = vsub.s32 0, %v306
        %v308 = vrot.slane %v303, %v307
        %v309 = vlaneseq
        %v310 = vshrl.u32 %v309, 7
        %v311 = vsub.s32 1, %v310
        %v312 = vrot.slane %v303, %v311
        %v315 = vadd.f32 %v301, %v308
        %v316 = vadd.f32 %v302, %v312
        %v317 = vpack.c.bf16 %v315, %v315
        %v318 = vpack.c.bf16 %v316, %v316
        %v319 = vld [vmem:[#allocation5] sm:$0xff]
        %v320 = vld [vmem:[#allocation5 + $0x8] sm:$0xff]
        %v321 = vld [vmem:[#allocation5 + $0x10] sm:$0xff]
        %v322 = vld [vmem:[#allocation5 + $0x18] sm:$0xff]
        %v323 = vld [vmem:[#allocation5 + $0x20] sm:$0xff]
        %v324 = vld [vmem:[#allocation5 + $0x28] sm:$0xff]
        %v325 = vld [vmem:[#allocation5 + $0x30] sm:$0xff]
        %v326 = vld [vmem:[#allocation5 + $0x38] sm:$0xff]
        %v327 = vld [vmem:[#allocation5 + $0x40] sm:$0xff]
        %v328 = vld [vmem:[#allocation5 + $0x48] sm:$0xff]
        %v329 = vld [vmem:[#allocation5 + $0x50] sm:$0xff]
        %v330 = vld [vmem:[#allocation5 + $0x58] sm:$0xff]
        %v331 = vld [vmem:[#allocation5 + $0x60] sm:$0xff]
        %v332 = vld [vmem:[#allocation5 + $0x68] sm:$0xff]
        %v333 = vld [vmem:[#allocation5 + $0x70] sm:$0xff]
        %v334 = vld [vmem:[#allocation5 + $0x78] sm:$0xff]
        %v335 = vld [vmem:[#allocation5 + $0x80] sm:$0xff]
        %v336 = vld [vmem:[#allocation5 + $0x88] sm:$0xff]
        %v337 = vld [vmem:[#allocation5 + $0x90] sm:$0xff]
        %v338 = vld [vmem:[#allocation5 + $0x98] sm:$0xff]
        %v339 = vld [vmem:[#allocation5 + $0xa0] sm:$0xff]
        %v340 = vld [vmem:[#allocation5 + $0xa8] sm:$0xff]
        %v341 = vld [vmem:[#allocation5 + $0xb0] sm:$0xff]
        %v342 = vld [vmem:[#allocation5 + $0xb8] sm:$0xff]
        %v343 = vld [vmem:[#allocation5 + $0xc0] sm:$0xff]
        %v344 = vld [vmem:[#allocation5 + $0xc8] sm:$0xff]
        %v345 = vld [vmem:[#allocation5 + $0xd0] sm:$0xff]
        %v346 = vld [vmem:[#allocation5 + $0xd8] sm:$0xff]
        %v347 = vld [vmem:[#allocation5 + $0xe0] sm:$0xff]
        %v348 = vld [vmem:[#allocation5 + $0xe8] sm:$0xff]
        %v349 = vld [vmem:[#allocation5 + $0xf0] sm:$0xff]
        %v350 = vld [vmem:[#allocation5 + $0xf8] sm:$0xff]
        %v351 = vld [vmem:[#allocation5 + $0x100] sm:$0xff]
        %v352 = vld [vmem:[#allocation5 + $0x108] sm:$0xff]
        %v353 = vld [vmem:[#allocation5 + $0x110] sm:$0xff]
        %v354 = vld [vmem:[#allocation5 + $0x118] sm:$0xff]
        %v355 = vld [vmem:[#allocation5 + $0x120] sm:$0xff]
        %v356 = vld [vmem:[#allocation5 + $0x128] sm:$0xff]
        %v357 = vld [vmem:[#allocation5 + $0x130] sm:$0xff]
        %v358 = vld [vmem:[#allocation5 + $0x138] sm:$0xff]
        %v359 = vld [vmem:[#allocation5 + $0x140] sm:$0xff]
        %v360 = vld [vmem:[#allocation5 + $0x148] sm:$0xff]
        %v361 = vld [vmem:[#allocation5 + $0x150] sm:$0xff]
        %v362 = vld [vmem:[#allocation5 + $0x158] sm:$0xff]
        %v363 = vld [vmem:[#allocation5 + $0x160] sm:$0xff]
        %v364 = vld [vmem:[#allocation5 + $0x168] sm:$0xff]
        %v365 = vld [vmem:[#allocation5 + $0x170] sm:$0xff]
        %v366 = vld [vmem:[#allocation5 + $0x178] sm:$0xff]
        %v367 = vld [vmem:[#allocation5 + $0x180] sm:$0xff]
        %v368 = vld [vmem:[#allocation5 + $0x188] sm:$0xff]
        %v369 = vld [vmem:[#allocation5 + $0x190] sm:$0xff]
        %v370 = vld [vmem:[#allocation5 + $0x198] sm:$0xff]
        %v371 = vld [vmem:[#allocation5 + $0x1a0] sm:$0xff]
        %v372 = vld [vmem:[#allocation5 + $0x1a8] sm:$0xff]
        %v373 = vld [vmem:[#allocation5 + $0x1b0] sm:$0xff]
        %v374 = vld [vmem:[#allocation5 + $0x1b8] sm:$0xff]
        %v375 = vld [vmem:[#allocation5 + $0x1c0] sm:$0xff]
        %v376 = vld [vmem:[#allocation5 + $0x1c8] sm:$0xff]
        %v377 = vld [vmem:[#allocation5 + $0x1d0] sm:$0xff]
        %v378 = vld [vmem:[#allocation5 + $0x1d8] sm:$0xff]
        %v379 = vld [vmem:[#allocation5 + $0x1e0] sm:$0xff]
        %v380 = vld [vmem:[#allocation5 + $0x1e8] sm:$0xff]
        %v381 = vld [vmem:[#allocation5 + $0x1f0] sm:$0xff]
        %v382 = vld [vmem:[#allocation5 + $0x1f8] sm:$0xff]
        %v383 = vld [vmem:[#allocation5 + $0x200] sm:$0xff]
        %v384 = vld [vmem:[#allocation5 + $0x208] sm:$0xff]
        %v385 = vld [vmem:[#allocation5 + $0x210] sm:$0xff]
        %v386 = vld [vmem:[#allocation5 + $0x218] sm:$0xff]
        %v387 = vld [vmem:[#allocation5 + $0x220] sm:$0xff]
        %v388 = vld [vmem:[#allocation5 + $0x228] sm:$0xff]
        %v389 = vld [vmem:[#allocation5 + $0x230] sm:$0xff]
        %v390 = vld [vmem:[#allocation5 + $0x238] sm:$0xff]
        %v391 = vld [vmem:[#allocation5 + $0x240] sm:$0xff]
        %v392 = vld [vmem:[#allocation5 + $0x248] sm:$0xff]
        %v393 = vld [vmem:[#allocation5 + $0x250] sm:$0xff]
        %v394 = vld [vmem:[#allocation5 + $0x258] sm:$0xff]
        %v395 = vld [vmem:[#allocation5 + $0x260] sm:$0xff]
        %v396 = vld [vmem:[#allocation5 + $0x268] sm:$0xff]
        %v397 = vld [vmem:[#allocation5 + $0x270] sm:$0xff]
        %v398 = vld [vmem:[#allocation5 + $0x278] sm:$0xff]
        %v399 = vld [vmem:[#allocation5 + $0x280] sm:$0xff]
        %v400 = vld [vmem:[#allocation5 + $0x288] sm:$0xff]
        %v401 = vld [vmem:[#allocation5 + $0x290] sm:$0xff]
        %v402 = vld [vmem:[#allocation5 + $0x298] sm:$0xff]
        %v403 = vld [vmem:[#allocation5 + $0x2a0] sm:$0xff]
        %v404 = vld [vmem:[#allocation5 + $0x2a8] sm:$0xff]
        %v405 = vld [vmem:[#allocation5 + $0x2b0] sm:$0xff]
        %v406 = vld [vmem:[#allocation5 + $0x2b8] sm:$0xff]
        %v407 = vld [vmem:[#allocation5 + $0x2c0] sm:$0xff]
        %v408 = vld [vmem:[#allocation5 + $0x2c8] sm:$0xff]
        %v409 = vld [vmem:[#allocation5 + $0x2d0] sm:$0xff]
        %v410 = vld [vmem:[#allocation5 + $0x2d8] sm:$0xff]
        %v411 = vld [vmem:[#allocation5 + $0x2e0] sm:$0xff]
        %v412 = vld [vmem:[#allocation5 + $0x2e8] sm:$0xff]
        %v413 = vld [vmem:[#allocation5 + $0x2f0] sm:$0xff]
        %v414 = vld [vmem:[#allocation5 + $0x2f8] sm:$0xff]
        %v415 = vld [vmem:[#allocation5 + $0x300] sm:$0xff]
        %v416 = vld [vmem:[#allocation5 + $0x308] sm:$0xff]
        %v417 = vld [vmem:[#allocation5 + $0x310] sm:$0xff]
        %v418 = vld [vmem:[#allocation5 + $0x318] sm:$0xff]
        %v419 = vld [vmem:[#allocation5 + $0x320] sm:$0xff]
        %v420 = vld [vmem:[#allocation5 + $0x328] sm:$0xff]
        %v421 = vld [vmem:[#allocation5 + $0x330] sm:$0xff]
        %v422 = vld [vmem:[#allocation5 + $0x338] sm:$0xff]
        %v423 = vld [vmem:[#allocation5 + $0x340] sm:$0xff]
        %v424 = vld [vmem:[#allocation5 + $0x348] sm:$0xff]
        %v425 = vld [vmem:[#allocation5 + $0x350] sm:$0xff]
        %v426 = vld [vmem:[#allocation5 + $0x358] sm:$0xff]
        %v427 = vld [vmem:[#allocation5 + $0x360] sm:$0xff]
        %v428 = vld [vmem:[#allocation5 + $0x368] sm:$0xff]
        %v429 = vld [vmem:[#allocation5 + $0x370] sm:$0xff]
        %v430 = vld [vmem:[#allocation5 + $0x378] sm:$0xff]
        %v431 = vld [vmem:[#allocation5 + $0x380] sm:$0xff]
        %v432 = vld [vmem:[#allocation5 + $0x388] sm:$0xff]
        %v433 = vld [vmem:[#allocation5 + $0x390] sm:$0xff]
        %v434 = vld [vmem:[#allocation5 + $0x398] sm:$0xff]
        %v435 = vld [vmem:[#allocation5 + $0x3a0] sm:$0xff]
        %v436 = vld [vmem:[#allocation5 + $0x3a8] sm:$0xff]
        %v437 = vld [vmem:[#allocation5 + $0x3b0] sm:$0xff]
        %v438 = vld [vmem:[#allocation5 + $0x3b8] sm:$0xff]
        %v439 = vld [vmem:[#allocation5 + $0x3c0] sm:$0xff]
        %v440 = vld [vmem:[#allocation5 + $0x3c8] sm:$0xff]
        %v441 = vld [vmem:[#allocation5 + $0x3d0] sm:$0xff]
        %v442 = vld [vmem:[#allocation5 + $0x3d8] sm:$0xff]
        %v443 = vld [vmem:[#allocation5 + $0x3e0] sm:$0xff]
        %v444 = vld [vmem:[#allocation5 + $0x3e8] sm:$0xff]
        %v445 = vld [vmem:[#allocation5 + $0x3f0] sm:$0xff]
        %v446 = vld [vmem:[#allocation5 + $0x3f8] sm:$0xff]
        %v575 = vunpack.c.l.b16 %v319
        %v576 = vunpack.c.h.b16 %v319
        %v577 = vunpack.c.l.b16 %v320
        %v578 = vunpack.c.h.b16 %v320
        %v579 = vunpack.c.l.b16 %v321
        %v580 = vunpack.c.h.b16 %v321
        %v581 = vunpack.c.l.b16 %v322
        %v582 = vunpack.c.h.b16 %v322
        %v583 = vunpack.c.l.b16 %v323
        %v584 = vunpack.c.h.b16 %v323
        %v585 = vunpack.c.l.b16 %v324
        %v586 = vunpack.c.h.b16 %v324
        %v587 = vunpack.c.l.b16 %v325
        %v588 = vunpack.c.h.b16 %v325
        %v589 = vunpack.c.l.b16 %v326
        %v590 = vunpack.c.h.b16 %v326
        %v591 = vunpack.c.l.b16 %v327
        %v592 = vunpack.c.h.b16 %v327
        %v593 = vunpack.c.l.b16 %v328
        %v594 = vunpack.c.h.b16 %v328
        %v595 = vunpack.c.l.b16 %v329
        %v596 = vunpack.c.h.b16 %v329
        %v597 = vunpack.c.l.b16 %v330
        %v598 = vunpack.c.h.b16 %v330
        %v599 = vunpack.c.l.b16 %v331
        %v600 = vunpack.c.h.b16 %v331
        %v601 = vunpack.c.l.b16 %v332
        %v602 = vunpack.c.h.b16 %v332
        %v603 = vunpack.c.l.b16 %v333
        %v604 = vunpack.c.h.b16 %v333
        %v605 = vunpack.c.l.b16 %v334
        %v606 = vunpack.c.h.b16 %v334
        %v607 = vunpack.c.l.b16 %v335
        %v608 = vunpack.c.h.b16 %v335
        %v609 = vunpack.c.l.b16 %v336
        %v610 = vunpack.c.h.b16 %v336
        %v611 = vunpack.c.l.b16 %v337
        %v612 = vunpack.c.h.b16 %v337
        %v613 = vunpack.c.l.b16 %v338
        %v614 = vunpack.c.h.b16 %v338
        %v615 = vunpack.c.l.b16 %v339
        %v616 = vunpack.c.h.b16 %v339
        %v617 = vunpack.c.l.b16 %v340
        %v618 = vunpack.c.h.b16 %v340
        %v619 = vunpack.c.l.b16 %v341
        %v620 = vunpack.c.h.b16 %v341
        %v621 = vunpack.c.l.b16 %v342
        %v622 = vunpack.c.h.b16 %v342
        %v623 = vunpack.c.l.b16 %v343
        %v624 = vunpack.c.h.b16 %v343
        %v625 = vunpack.c.l.b16 %v344
        %v626 = vunpack.c.h.b16 %v344
        %v627 = vunpack.c.l.b16 %v345
        %v628 = vunpack.c.h.b16 %v345
        %v629 = vunpack.c.l.b16 %v346
        %v630 = vunpack.c.h.b16 %v346
        %v631 = vunpack.c.l.b16 %v347
        %v632 = vunpack.c.h.b16 %v347
        %v633 = vunpack.c.l.b16 %v348
        %v634 = vunpack.c.h.b16 %v348
        %v635 = vunpack.c.l.b16 %v349
        %v636 = vunpack.c.h.b16 %v349
        %v637 = vunpack.c.l.b16 %v350
        %v638 = vunpack.c.h.b16 %v350
        %v639 = vunpack.c.l.b16 %v351
        %v640 = vunpack.c.h.b16 %v351
        %v641 = vunpack.c.l.b16 %v352
        %v642 = vunpack.c.h.b16 %v352
        %v643 = vunpack.c.l.b16 %v353
        %v644 = vunpack.c.h.b16 %v353
        %v645 = vunpack.c.l.b16 %v354
        %v646 = vunpack.c.h.b16 %v354
        %v647 = vunpack.c.l.b16 %v355
        %v648 = vunpack.c.h.b16 %v355
        %v649 = vunpack.c.l.b16 %v356
        %v650 = vunpack.c.h.b16 %v356
        %v651 = vunpack.c.l.b16 %v357
        %v652 = vunpack.c.h.b16 %v357
        %v653 = vunpack.c.l.b16 %v358
        %v654 = vunpack.c.h.b16 %v358
        %v655 = vunpack.c.l.b16 %v359
        %v656 = vunpack.c.h.b16 %v359
        %v657 = vunpack.c.l.b16 %v360
        %v658 = vunpack.c.h.b16 %v360
        %v659 = vunpack.c.l.b16 %v361
        %v660 = vunpack.c.h.b16 %v361
        %v661 = vunpack.c.l.b16 %v362
        %v662 = vunpack.c.h.b16 %v362
        %v663 = vunpack.c.l.b16 %v363
        %v664 = vunpack.c.h.b16 %v363
        %v665 = vunpack.c.l.b16 %v364
        %v666 = vunpack.c.h.b16 %v364
        %v667 = vunpack.c.l.b16 %v365
        %v668 = vunpack.c.h.b16 %v365
        %v669 = vunpack.c.l.b16 %v366
        %v670 = vunpack.c.h.b16 %v366
        %v671 = vunpack.c.l.b16 %v367
        %v672 = vunpack.c.h.b16 %v367
        %v673 = vunpack.c.l.b16 %v368
        %v674 = vunpack.c.h.b16 %v368
        %v675 = vunpack.c.l.b16 %v369
        %v676 = vunpack.c.h.b16 %v369
        %v677 = vunpack.c.l.b16 %v370
        %v678 = vunpack.c.h.b16 %v370
        %v679 = vunpack.c.l.b16 %v371
        %v680 = vunpack.c.h.b16 %v371
        %v681 = vunpack.c.l.b16 %v372
        %v682 = vunpack.c.h.b16 %v372
        %v683 = vunpack.c.l.b16 %v373
        %v684 = vunpack.c.h.b16 %v373
        %v685 = vunpack.c.l.b16 %v374
        %v686 = vunpack.c.h.b16 %v374
        %v687 = vunpack.c.l.b16 %v375
        %v688 = vunpack.c.h.b16 %v375
        %v689 = vunpack.c.l.b16 %v376
        %v690 = vunpack.c.h.b16 %v376
        %v691 = vunpack.c.l.b16 %v377
        %v692 = vunpack.c.h.b16 %v377
        %v693 = vunpack.c.l.b16 %v378
        %v694 = vunpack.c.h.b16 %v378
        %v695 = vunpack.c.l.b16 %v379
        %v696 = vunpack.c.h.b16 %v379
        %v697 = vunpack.c.l.b16 %v380
        %v698 = vunpack.c.h.b16 %v380
        %v699 = vunpack.c.l.b16 %v381
        %v700 = vunpack.c.h.b16 %v381
        %v701 = vunpack.c.l.b16 %v382
        %v702 = vunpack.c.h.b16 %v382
        %v703 = vunpack.c.l.b16 %v383
        %v704 = vunpack.c.h.b16 %v383
        %v705 = vunpack.c.l.b16 %v384
        %v706 = vunpack.c.h.b16 %v384
        %v707 = vunpack.c.l.b16 %v385
        %v708 = vunpack.c.h.b16 %v385
        %v709 = vunpack.c.l.b16 %v386
        %v710 = vunpack.c.h.b16 %v386
        %v711 = vunpack.c.l.b16 %v387
        %v712 = vunpack.c.h.b16 %v387
        %v713 = vunpack.c.l.b16 %v388
        %v714 = vunpack.c.h.b16 %v388
        %v715 = vunpack.c.l.b16 %v389
        %v716 = vunpack.c.h.b16 %v389
        %v717 = vunpack.c.l.b16 %v390
        %v718 = vunpack.c.h.b16 %v390
        %v719 = vunpack.c.l.b16 %v391
        %v720 = vunpack.c.h.b16 %v391
        %v721 = vunpack.c.l.b16 %v392
        %v722 = vunpack.c.h.b16 %v392
        %v723 = vunpack.c.l.b16 %v393
        %v724 = vunpack.c.h.b16 %v393
        %v725 = vunpack.c.l.b16 %v394
        %v726 = vunpack.c.h.b16 %v394
        %v727 = vunpack.c.l.b16 %v395
        %v728 = vunpack.c.h.b16 %v395
        %v729 = vunpack.c.l.b16 %v396
        %v730 = vunpack.c.h.b16 %v396
        %v731 = vunpack.c.l.b16 %v397
        %v732 = vunpack.c.h.b16 %v397
        %v733 = vunpack.c.l.b16 %v398
        %v734 = vunpack.c.h.b16 %v398
        %v735 = vunpack.c.l.b16 %v399
        %v736 = vunpack.c.h.b16 %v399
        %v737 = vunpack.c.l.b16 %v400
        %v738 = vunpack.c.h.b16 %v400
        %v739 = vunpack.c.l.b16 %v401
        %v740 = vunpack.c.h.b16 %v401
        %v741 = vunpack.c.l.b16 %v402
        %v742 = vunpack.c.h.b16 %v402
        %v743 = vunpack.c.l.b16 %v403
        %v744 = vunpack.c.h.b16 %v403
        %v745 = vunpack.c.l.b16 %v404
        %v746 = vunpack.c.h.b16 %v404
        %v747 = vunpack.c.l.b16 %v405
        %v748 = vunpack.c.h.b16 %v405
        %v749 = vunpack.c.l.b16 %v406
        %v750 = vunpack.c.h.b16 %v406
        %v751 = vunpack.c.l.b16 %v407
        %v752 = vunpack.c.h.b16 %v407
        %v753 = vunpack.c.l.b16 %v408
        %v754 = vunpack.c.h.b16 %v408
        %v755 = vunpack.c.l.b16 %v409
        %v756 = vunpack.c.h.b16 %v409
        %v757 = vunpack.c.l.b16 %v410
        %v758 = vunpack.c.h.b16 %v410
        %v759 = vunpack.c.l.b16 %v411
        %v760 = vunpack.c.h.b16 %v411
        %v761 = vunpack.c.l.b16 %v412
        %v762 = vunpack.c.h.b16 %v412
        %v763 = vunpack.c.l.b16 %v413
        %v764 = vunpack.c.h.b16 %v413
        %v765 = vunpack.c.l.b16 %v414
        %v766 = vunpack.c.h.b16 %v414
        %v767 = vunpack.c.l.b16 %v415
        %v768 = vunpack.c.h.b16 %v415
        %v769 = vunpack.c.l.b16 %v416
        %v770 = vunpack.c.h.b16 %v416
        %v771 = vunpack.c.l.b16 %v417
        %v772 = vunpack.c.h.b16 %v417
        %v773 = vunpack.c.l.b16 %v418
        %v774 = vunpack.c.h.b16 %v418
        %v775 = vunpack.c.l.b16 %v419
        %v776 = vunpack.c.h.b16 %v419
        %v777 = vunpack.c.l.b16 %v420
        %v778 = vunpack.c.h.b16 %v420
        %v779 = vunpack.c.l.b16 %v421
        %v780 = vunpack.c.h.b16 %v421
        %v781 = vunpack.c.l.b16 %v422
        %v782 = vunpack.c.h.b16 %v422
        %v783 = vunpack.c.l.b16 %v423
        %v784 = vunpack.c.h.b16 %v423
        %v785 = vunpack.c.l.b16 %v424
        %v786 = vunpack.c.h.b16 %v424
        %v787 = vunpack.c.l.b16 %v425
        %v788 = vunpack.c.h.b16 %v425
        %v789 = vunpack.c.l.b16 %v426
        %v790 = vunpack.c.h.b16 %v426
        %v791 = vunpack.c.l.b16 %v427
        %v792 = vunpack.c.h.b16 %v427
        %v793 = vunpack.c.l.b16 %v428
        %v794 = vunpack.c.h.b16 %v428
        %v795 = vunpack.c.l.b16 %v429
        %v796 = vunpack.c.h.b16 %v429
        %v797 = vunpack.c.l.b16 %v430
        %v798 = vunpack.c.h.b16 %v430
        %v799 = vunpack.c.l.b16 %v431
        %v800 = vunpack.c.h.b16 %v431
        %v801 = vunpack.c.l.b16 %v432
        %v802 = vunpack.c.h.b16 %v432
        %v803 = vunpack.c.l.b16 %v433
        %v804 = vunpack.c.h.b16 %v433
        %v805 = vunpack.c.l.b16 %v434
        %v806 = vunpack.c.h.b16 %v434
        %v807 = vunpack.c.l.b16 %v435
        %v808 = vunpack.c.h.b16 %v435
        %v809 = vunpack.c.l.b16 %v436
        %v810 = vunpack.c.h.b16 %v436
        %v811 = vunpack.c.l.b16 %v437
        %v812 = vunpack.c.h.b16 %v437
        %v813 = vunpack.c.l.b16 %v438
        %v814 = vunpack.c.h.b16 %v438
        %v815 = vunpack.c.l.b16 %v439
        %v816 = vunpack.c.h.b16 %v439
        %v817 = vunpack.c.l.b16 %v440
        %v818 = vunpack.c.h.b16 %v440
        %v819 = vunpack.c.l.b16 %v441
        %v820 = vunpack.c.h.b16 %v441
        %v821 = vunpack.c.l.b16 %v442
        %v822 = vunpack.c.h.b16 %v442
        %v823 = vunpack.c.l.b16 %v443
        %v824 = vunpack.c.h.b16 %v443
        %v825 = vunpack.c.l.b16 %v444
        %v826 = vunpack.c.h.b16 %v444
        %v827 = vunpack.c.l.b16 %v445
        %v828 = vunpack.c.h.b16 %v445
        %v829 = vunpack.c.l.b16 %v446
        %v830 = vunpack.c.h.b16 %v446
        %v831 = vpack.c.b16 %v583, %v575
        %v832 = vpack.c.b16 %v584, %v576
        %v833 = vpack.c.b16 %v585, %v577
        %v834 = vpack.c.b16 %v586, %v578
        %v835 = vpack.c.b16 %v587, %v579
        %v836 = vpack.c.b16 %v588, %v580
        %v837 = vpack.c.b16 %v589, %v581
        %v838 = vpack.c.b16 %v590, %v582
        %v839 = vpack.c.b16 %v599, %v591
        %v840 = vpack.c.b16 %v600, %v592
        %v841 = vpack.c.b16 %v601, %v593
        %v842 = vpack.c.b16 %v602, %v594
        %v843 = vpack.c.b16 %v603, %v595
        %v844 = vpack.c.b16 %v604, %v596
        %v845 = vpack.c.b16 %v605, %v597
        %v846 = vpack.c.b16 %v606, %v598
        %v847 = vpack.c.b16 %v615, %v607
        %v848 = vpack.c.b16 %v616, %v608
        %v849 = vpack.c.b16 %v617, %v609
        %v850 = vpack.c.b16 %v618, %v610
        %v851 = vpack.c.b16 %v619, %v611
        %v852 = vpack.c.b16 %v620, %v612
        %v853 = vpack.c.b16 %v621, %v613
        %v854 = vpack.c.b16 %v622, %v614
        %v855 = vpack.c.b16 %v631, %v623
        %v856 = vpack.c.b16 %v632, %v624
        %v857 = vpack.c.b16 %v633, %v625
        %v858 = vpack.c.b16 %v634, %v626
        %v859 = vpack.c.b16 %v635, %v627
        %v860 = vpack.c.b16 %v636, %v628
        %v861 = vpack.c.b16 %v637, %v629
        %v862 = vpack.c.b16 %v638, %v630
        %v863 = vpack.c.b16 %v647, %v639
        %v864 = vpack.c.b16 %v648, %v640
        %v865 = vpack.c.b16 %v649, %v641
        %v866 = vpack.c.b16 %v650, %v642
        %v867 = vpack.c.b16 %v651, %v643
        %v868 = vpack.c.b16 %v652, %v644
        %v869 = vpack.c.b16 %v653, %v645
        %v870 = vpack.c.b16 %v654, %v646
        %v871 = vpack.c.b16 %v663, %v655
        %v872 = vpack.c.b16 %v664, %v656
        %v873 = vpack.c.b16 %v665, %v657
        %v874 = vpack.c.b16 %v666, %v658
        %v875 = vpack.c.b16 %v667, %v659
        %v876 = vpack.c.b16 %v668, %v660
        %v877 = vpack.c.b16 %v669, %v661
        %v878 = vpack.c.b16 %v670, %v662
        %v879 = vpack.c.b16 %v679, %v671
        %v880 = vpack.c.b16 %v680, %v672
        %v881 = vpack.c.b16 %v681, %v673
        %v882 = vpack.c.b16 %v682, %v674
        %v883 = vpack.c.b16 %v683, %v675
        %v884 = vpack.c.b16 %v684, %v676
        %v885 = vpack.c.b16 %v685, %v677
        %v886 = vpack.c.b16 %v686, %v678
        %v887 = vpack.c.b16 %v695, %v687
        %v888 = vpack.c.b16 %v696, %v688
        %v889 = vpack.c.b16 %v697, %v689
        %v890 = vpack.c.b16 %v698, %v690
        %v891 = vpack.c.b16 %v699, %v691
        %v892 = vpack.c.b16 %v700, %v692
        %v893 = vpack.c.b16 %v701, %v693
        %v894 = vpack.c.b16 %v702, %v694
        %v895 = vpack.c.b16 %v711, %v703
        %v896 = vpack.c.b16 %v712, %v704
        %v897 = vpack.c.b16 %v713, %v705
        %v898 = vpack.c.b16 %v714, %v706
        %v899 = vpack.c.b16 %v715, %v707
        %v900 = vpack.c.b16 %v716, %v708
        %v901 = vpack.c.b16 %v717, %v709
        %v902 = vpack.c.b16 %v718, %v710
        %v903 = vpack.c.b16 %v727, %v719
        %v904 = vpack.c.b16 %v728, %v720
        %v905 = vpack.c.b16 %v729, %v721
        %v906 = vpack.c.b16 %v730, %v722
        %v907 = vpack.c.b16 %v731, %v723
        %v908 = vpack.c.b16 %v732, %v724
        %v909 = vpack.c.b16 %v733, %v725
        %v910 = vpack.c.b16 %v734, %v726
        %v911 = vpack.c.b16 %v743, %v735
        %v912 = vpack.c.b16 %v744, %v736
        %v913 = vpack.c.b16 %v745, %v737
        %v914 = vpack.c.b16 %v746, %v738
        %v915 = vpack.c.b16 %v747, %v739
        %v916 = vpack.c.b16 %v748, %v740
        %v917 = vpack.c.b16 %v749, %v741
        %v918 = vpack.c.b16 %v750, %v742
        %v919 = vpack.c.b16 %v759, %v751
        %v920 = vpack.c.b16 %v760, %v752
        %v921 = vpack.c.b16 %v761, %v753
        %v922 = vpack.c.b16 %v762, %v754
        %v923 = vpack.c.b16 %v763, %v755
        %v924 = vpack.c.b16 %v764, %v756
        %v925 = vpack.c.b16 %v765, %v757
        %v926 = vpack.c.b16 %v766, %v758
        %v927 = vpack.c.b16 %v775, %v767
        %v928 = vpack.c.b16 %v776, %v768
        %v929 = vpack.c.b16 %v777, %v769
        %v930 = vpack.c.b16 %v778, %v770
        %v931 = vpack.c.b16 %v779, %v771
        %v932 = vpack.c.b16 %v780, %v772
        %v933 = vpack.c.b16 %v781, %v773
        %v934 = vpack.c.b16 %v782, %v774
        %v935 = vpack.c.b16 %v791, %v783
        %v936 = vpack.c.b16 %v792, %v784
        %v937 = vpack.c.b16 %v793, %v785
        %v938 = vpack.c.b16 %v794, %v786
        %v939 = vpack.c.b16 %v795, %v787
        %v940 = vpack.c.b16 %v796, %v788
        %v941 = vpack.c.b16 %v797, %v789
        %v942 = vpack.c.b16 %v798, %v790
        %v943 = vpack.c.b16 %v807, %v799
        %v944 = vpack.c.b16 %v808, %v800
        %v945 = vpack.c.b16 %v809, %v801
        %v946 = vpack.c.b16 %v810, %v802
        %v947 = vpack.c.b16 %v811, %v803
        %v948 = vpack.c.b16 %v812, %v804
        %v949 = vpack.c.b16 %v813, %v805
        %v950 = vpack.c.b16 %v814, %v806
        %v951 = vpack.c.b16 %v823, %v815
        %v952 = vpack.c.b16 %v824, %v816
        %v953 = vpack.c.b16 %v825, %v817
        %v954 = vpack.c.b16 %v826, %v818
        %v955 = vpack.c.b16 %v827, %v819
        %v956 = vpack.c.b16 %v828, %v820
        %v957 = vpack.c.b16 %v829, %v821
        %v958 = vpack.c.b16 %v830, %v822
        %1087 = vmatprep.subr.bf16.mxu0 %v832
        %1088 = vmatpush1.bf16.msra.mxu0 %v831
        %1089 = vmatprep.subr.bf16.mxu0 %v840
        %1090 = vmatpush1.bf16.msra.mxu0 %v839
        %1091 = vmatprep.subr.bf16.mxu0 %v848
        %1092 = vmatpush1.bf16.msra.mxu0 %v847
        %1093 = vmatprep.subr.bf16.mxu0 %v856
        %1094 = vmatpush1.bf16.msra.mxu0 %v855
        %1095 = vmatprep.subr.bf16.mxu0 %v864
        %1096 = vmatpush1.bf16.msra.mxu0 %v863
        %1097 = vmatprep.subr.bf16.mxu0 %v872
        %1098 = vmatpush1.bf16.msra.mxu0 %v871
        %1099 = vmatprep.subr.bf16.mxu0 %v880
        %1100 = vmatpush1.bf16.msra.mxu0 %v879
        %1101 = vmatprep.subr.bf16.mxu0 %v888
        %1102 = vmatpush1.bf16.msra.mxu0 %v887
        %1103 = vmatprep.subr.bf16.mxu0 %v896
        %1104 = vmatpush1.bf16.msra.mxu0 %v895
        %1105 = vmatprep.subr.bf16.mxu0 %v904
        %1106 = vmatpush1.bf16.msra.mxu0 %v903
        %1107 = vmatprep.subr.bf16.mxu0 %v912
        %1108 = vmatpush1.bf16.msra.mxu0 %v911
        %1109 = vmatprep.subr.bf16.mxu0 %v920
        %1110 = vmatpush1.bf16.msra.mxu0 %v919
        %1111 = vmatprep.subr.bf16.mxu0 %v928
        %1112 = vmatpush1.bf16.msra.mxu0 %v927
        %1113 = vmatprep.subr.bf16.mxu0 %v936
        %1114 = vmatpush1.bf16.msra.mxu0 %v935
        %1115 = vmatprep.subr.bf16.mxu0 %v944
        %1116 = vmatpush1.bf16.msra.mxu0 %v943
        %1117 = vmatprep.subr.bf16.mxu0 %v952
        %1118 = vmatpush1.bf16.msra.mxu0 %v951
        %1119 = vmatprep.mubr.bf16.mxu0 %v318
        %1120 = vmatmul.mubr.bf16.gmra.mrb[0].mxu0 %v317
        %v1121 = vpop.f32.mrb[0].mxu0
        %v1122 = vadd.f32 0.0, %v1121
        %v1123 = vpop.f32.mrb[0].mxu0
        %v1124 = vadd.f32 0.0, %v1123
        %v1125 = vpop.f32.mrb[0].mxu0
        %v1126 = vpop.f32.mrb[0].mxu0
        %1127 = vdwg.mxu0
        %1128 = vmatprep.subr.bf16.mxu0 %v834
        %1129 = vmatpush1.bf16.msra.mxu0 %v833
        %1130 = vmatprep.subr.bf16.mxu0 %v842
        %1131 = vmatpush1.bf16.msra.mxu0 %v841
        %1132 = vmatprep.subr.bf16.mxu0 %v850
        %1133 = vmatpush1.bf16.msra.mxu0 %v849
        %1134 = vmatprep.subr.bf16.mxu0 %v858
        %1135 = vmatpush1.bf16.msra.mxu0 %v857
        %1136 = vmatprep.subr.bf16.mxu0 %v866
        %1137 = vmatpush1.bf16.msra.mxu0 %v865
        %1138 = vmatprep.subr.bf16.mxu0 %v874
        %1139 = vmatpush1.bf16.msra.mxu0 %v873
        %1140 = vmatprep.subr.bf16.mxu0 %v882
        %1141 = vmatpush1.bf16.msra.mxu0 %v881
        %1142 = vmatprep.subr.bf16.mxu0 %v890
        %1143 = vmatpush1.bf16.msra.mxu0 %v889
        %1144 = vmatprep.subr.bf16.mxu0 %v898
        %1145 = vmatpush1.bf16.msra.mxu0 %v897
        %1146 = vmatprep.subr.bf16.mxu0 %v906
        %1147 = vmatpush1.bf16.msra.mxu0 %v905
        %1148 = vmatprep.subr.bf16.mxu0 %v914
        %1149 = vmatpush1.bf16.msra.mxu0 %v913
        %1150 = vmatprep.subr.bf16.mxu0 %v922
        %1151 = vmatpush1.bf16.msra.mxu0 %v921
        %1152 = vmatprep.subr.bf16.mxu0 %v930
        %1153 = vmatpush1.bf16.msra.mxu0 %v929
        %1154 = vmatprep.subr.bf16.mxu0 %v938
        %1155 = vmatpush1.bf16.msra.mxu0 %v937
        %1156 = vmatprep.subr.bf16.mxu0 %v946
        %1157 = vmatpush1.bf16.msra.mxu0 %v945
        %1158 = vmatprep.subr.bf16.mxu0 %v954
        %1159 = vmatpush1.bf16.msra.mxu0 %v953
        %1160 = vmatprep.mubr.bf16.mxu0 %v318
        %1161 = vmatmul.mubr.bf16.gmra.mrb[0].mxu0 %v317
        %v1162 = vpop.f32.mrb[0].mxu0
        %v1163 = vadd.f32 0.0, %v1162
        %v1164 = vpop.f32.mrb[0].mxu0
        %v1165 = vadd.f32 0.0, %v1164
        %v1166 = vpop.f32.mrb[0].mxu0
        %v1167 = vpop.f32.mrb[0].mxu0
        %1168 = vdwg.mxu0
        %1169 = vmatprep.subr.bf16.mxu0 %v836
        %1170 = vmatpush1.bf16.msra.mxu0 %v835
        %1171 = vmatprep.subr.bf16.mxu0 %v844
        %1172 = vmatpush1.bf16.msra.mxu0 %v843
        %1173 = vmatprep.subr.bf16.mxu0 %v852
        %1174 = vmatpush1.bf16.msra.mxu0 %v851
        %1175 = vmatprep.subr.bf16.mxu0 %v860
        %1176 = vmatpush1.bf16.msra.mxu0 %v859
        %1177 = vmatprep.subr.bf16.mxu0 %v868
        %1178 = vmatpush1.bf16.msra.mxu0 %v867
        %1179 = vmatprep.subr.bf16.mxu0 %v876
        %1180 = vmatpush1.bf16.msra.mxu0 %v875
        %1181 = vmatprep.subr.bf16.mxu0 %v884
        %1182 = vmatpush1.bf16.msra.mxu0 %v883
        %1183 = vmatprep.subr.bf16.mxu0 %v892
        %1184 = vmatpush1.bf16.msra.mxu0 %v891
        %1185 = vmatprep.subr.bf16.mxu0 %v900
        %1186 = vmatpush1.bf16.msra.mxu0 %v899
        %1187 = vmatprep.subr.bf16.mxu0 %v908
        %1188 = vmatpush1.bf16.msra.mxu0 %v907
        %1189 = vmatprep.subr.bf16.mxu0 %v916
        %1190 = vmatpush1.bf16.msra.mxu0 %v915
        %1191 = vmatprep.subr.bf16.mxu0 %v924
        %1192 = vmatpush1.bf16.msra.mxu0 %v923
        %1193 = vmatprep.subr.bf16.mxu0 %v932
        %1194 = vmatpush1.bf16.msra.mxu0 %v931
        %1195 = vmatprep.subr.bf16.mxu0 %v940
        %1196 = vmatpush1.bf16.msra.mxu0 %v939
        %1197 = vmatprep.subr.bf16.mxu0 %v948
        %1198 = vmatpush1.bf16.msra.mxu0 %v947
        %1199 = vmatprep.subr.bf16.mxu0 %v956
        %1200 = vmatpush1.bf16.msra.mxu0 %v955
        %1201 = vmatprep.mubr.bf16.mxu0 %v318
        %1202 = vmatmul.mubr.bf16.gmra.mrb[0].mxu0 %v317
        %v1203 = vpop.f32.mrb[0].mxu0
        %v1204 = vadd.f32 0.0, %v1203
        %v1205 = vpop.f32.mrb[0].mxu0
        %v1206 = vadd.f32 0.0, %v1205
        %v1207 = vpop.f32.mrb[0].mxu0
        %v1208 = vpop.f32.mrb[0].mxu0
        %1209 = vdwg.mxu0
        %1210 = vmatprep.subr.bf16.mxu0 %v838
        %1211 = vmatpush1.bf16.msra.mxu0 %v837
        %1212 = vmatprep.subr.bf16.mxu0 %v846
        %1213 = vmatpush1.bf16.msra.mxu0 %v845
        %1214 = vmatprep.subr.bf16.mxu0 %v854
        %1215 = vmatpush1.bf16.msra.mxu0 %v853
        %1216 = vmatprep.subr.bf16.mxu0 %v862
        %1217 = vmatpush1.bf16.msra.mxu0 %v861
        %1218 = vmatprep.subr.bf16.mxu0 %v870
        %1219 = vmatpush1.bf16.msra.mxu0 %v869
        %1220 = vmatprep.subr.bf16.mxu0 %v878
        %1221 = vmatpush1.bf16.msra.mxu0 %v877
        %1222 = vmatprep.subr.bf16.mxu0 %v886
        %1223 = vmatpush1.bf16.msra.mxu0 %v885
        %1224 = vmatprep.subr.bf16.mxu0 %v894
        %1225 = vmatpush1.bf16.msra.mxu0 %v893
        %1226 = vmatprep.subr.bf16.mxu0 %v902
        %1227 = vmatpush1.bf16.msra.mxu0 %v901
        %1228 = vmatprep.subr.bf16.mxu0 %v910
        %1229 = vmatpush1.bf16.msra.mxu0 %v909
        %1230 = vmatprep.subr.bf16.mxu0 %v918
        %1231 = vmatpush1.bf16.msra.mxu0 %v917
        %1232 = vmatprep.subr.bf16.mxu0 %v926
        %1233 = vmatpush1.bf16.msra.mxu0 %v925
        %1234 = vmatprep.subr.bf16.mxu0 %v934
        %1235 = vmatpush1.bf16.msra.mxu0 %v933
        %1236 = vmatprep.subr.bf16.mxu0 %v942
        %1237 = vmatpush1.bf16.msra.mxu0 %v941
        %1238 = vmatprep.subr.bf16.mxu0 %v950
        %1239 = vmatpush1.bf16.msra.mxu0 %v949
        %1240 = vmatprep.subr.bf16.mxu0 %v958
        %1241 = vmatpush1.bf16.msra.mxu0 %v957
        %1242 = vmatprep.mubr.bf16.mxu0 %v318
        %1243 = vmatmul.mubr.bf16.gmra.mrb[0].mxu0 %v317
        %v1244 = vpop.f32.mrb[0].mxu0
        %v1245 = vadd.f32 0.0, %v1244
        %v1246 = vpop.f32.mrb[0].mxu0
        %v1247 = vadd.f32 0.0, %v1246
        %v1248 = vpop.f32.mrb[0].mxu0
        %v1249 = vpop.f32.mrb[0].mxu0
        %1250 = vdwg.mxu0
        %v1251 = vmul.f32 %v1122, 0.5
        %v1252 = vmul.f32 %v1124, 0.5
        %v1253 = vmul.f32 %v1163, 0.5
        %v1254 = vmul.f32 %v1165, 0.5
        %v1255 = vmul.f32 %v1204, 0.5
        %v1256 = vmul.f32 %v1206, 0.5
        %v1257 = vmul.f32 %v1245, 0.5
        %v1258 = vmul.f32 %v1247, 0.5
        %v1259 = vmul.f32 %v1122, 0.70710677
        %v1260 = vmul.f32 %v1124, 0.70710677
        %v1261 = vmul.f32 %v1163, 0.70710677
        %v1262 = vmul.f32 %v1165, 0.70710677
        %v1263 = vmul.f32 %v1204, 0.70710677
        %v1264 = vmul.f32 %v1206, 0.70710677
        %v1265 = vmul.f32 %v1245, 0.70710677
        %v1266 = vmul.f32 %v1247, 0.70710677
        %v1267 = verf.f32.pop %v1259
        %v1268 = verf.f32.pop %v1260
        %v1269 = verf.f32.pop %v1261
        %v1270 = verf.f32.pop %v1262
        %v1271 = verf.f32.pop %v1263
        %v1272 = verf.f32.pop %v1264
        %v1273 = verf.f32.pop %v1265
        %v1274 = verf.f32.pop %v1266
        %v1275 = vadd.f32 %v1267, 1.0
        %v1276 = vadd.f32 %v1268, 1.0
        %v1277 = vadd.f32 %v1269, 1.0
        %v1278 = vadd.f32 %v1270, 1.0
        %v1279 = vadd.f32 %v1271, 1.0
        %v1280 = vadd.f32 %v1272, 1.0
        %v1281 = vadd.f32 %v1273, 1.0
        %v1282 = vadd.f32 %v1274, 1.0
        %v1283 = vmul.f32 %v1251, %v1275
        %v1284 = vmul.f32 %v1252, %v1276
        %v1285 = vmul.f32 %v1253, %v1277
        %v1286 = vmul.f32 %v1254, %v1278
        %v1287 = vmul.f32 %v1255, %v1279
        %v1288 = vmul.f32 %v1256, %v1280
        %v1289 = vmul.f32 %v1257, %v1281
        %v1290 = vmul.f32 %v1258, %v1282
        %v1291 = vpack.c.bf16 %v1283, %v1283
        %v1292 = vpack.c.bf16 %v1284, %v1284
        %v1293 = vpack.c.bf16 %v1285, %v1285
        %v1294 = vpack.c.bf16 %v1286, %v1286
        %v1295 = vpack.c.bf16 %v1287, %v1287
        %v1296 = vpack.c.bf16 %v1288, %v1288
        %v1297 = vpack.c.bf16 %v1289, %v1289
        %v1298 = vpack.c.bf16 %v1290, %v1290
        %v1299 = vld [vmem:[#allocation7] sm:$0xff]
        %v1300 = vld [vmem:[#allocation7 + $0x8] sm:$0xff]
        %v1301 = vld [vmem:[#allocation7 + $0x10] sm:$0xff]
        %v1302 = vld [vmem:[#allocation7 + $0x18] sm:$0xff]
        %v1303 = vld [vmem:[#allocation7 + $0x20] sm:$0xff]
        %v1304 = vld [vmem:[#allocation7 + $0x28] sm:$0xff]
        %v1305 = vld [vmem:[#allocation7 + $0x30] sm:$0xff]
        %v1306 = vld [vmem:[#allocation7 + $0x38] sm:$0xff]
        %v1307 = vld [vmem:[#allocation7 + $0x40] sm:$0xff]
        %v1308 = vld [vmem:[#allocation7 + $0x48] sm:$0xff]
        %v1309 = vld [vmem:[#allocation7 + $0x50] sm:$0xff]
        %v1310 = vld [vmem:[#allocation7 + $0x58] sm:$0xff]
        %v1311 = vld [vmem:[#allocation7 + $0x60] sm:$0xff]
        %v1312 = vld [vmem:[#allocation7 + $0x68] sm:$0xff]
        %v1313 = vld [vmem:[#allocation7 + $0x70] sm:$0xff]
        %v1314 = vld [vmem:[#allocation7 + $0x78] sm:$0xff]
        %v1315 = vld [vmem:[#allocation7 + $0x80] sm:$0xff]
        %v1316 = vld [vmem:[#allocation7 + $0x88] sm:$0xff]
        %v1317 = vld [vmem:[#allocation7 + $0x90] sm:$0xff]
        %v1318 = vld [vmem:[#allocation7 + $0x98] sm:$0xff]
        %v1319 = vld [vmem:[#allocation7 + $0xa0] sm:$0xff]
        %v1320 = vld [vmem:[#allocation7 + $0xa8] sm:$0xff]
        %v1321 = vld [vmem:[#allocation7 + $0xb0] sm:$0xff]
        %v1322 = vld [vmem:[#allocation7 + $0xb8] sm:$0xff]
        %v1323 = vld [vmem:[#allocation7 + $0xc0] sm:$0xff]
        %v1324 = vld [vmem:[#allocation7 + $0xc8] sm:$0xff]
        %v1325 = vld [vmem:[#allocation7 + $0xd0] sm:$0xff]
        %v1326 = vld [vmem:[#allocation7 + $0xd8] sm:$0xff]
        %v1327 = vld [vmem:[#allocation7 + $0xe0] sm:$0xff]
        %v1328 = vld [vmem:[#allocation7 + $0xe8] sm:$0xff]
        %v1329 = vld [vmem:[#allocation7 + $0xf0] sm:$0xff]
        %v1330 = vld [vmem:[#allocation7 + $0xf8] sm:$0xff]
        %v1331 = vld [vmem:[#allocation7 + $0x100] sm:$0xff]
        %v1332 = vld [vmem:[#allocation7 + $0x108] sm:$0xff]
        %v1333 = vld [vmem:[#allocation7 + $0x110] sm:$0xff]
        %v1334 = vld [vmem:[#allocation7 + $0x118] sm:$0xff]
        %v1335 = vld [vmem:[#allocation7 + $0x120] sm:$0xff]
        %v1336 = vld [vmem:[#allocation7 + $0x128] sm:$0xff]
        %v1337 = vld [vmem:[#allocation7 + $0x130] sm:$0xff]
        %v1338 = vld [vmem:[#allocation7 + $0x138] sm:$0xff]
        %v1339 = vld [vmem:[#allocation7 + $0x140] sm:$0xff]
        %v1340 = vld [vmem:[#allocation7 + $0x148] sm:$0xff]
        %v1341 = vld [vmem:[#allocation7 + $0x150] sm:$0xff]
        %v1342 = vld [vmem:[#allocation7 + $0x158] sm:$0xff]
        %v1343 = vld [vmem:[#allocation7 + $0x160] sm:$0xff]
        %v1344 = vld [vmem:[#allocation7 + $0x168] sm:$0xff]
        %v1345 = vld [vmem:[#allocation7 + $0x170] sm:$0xff]
        %v1346 = vld [vmem:[#allocation7 + $0x178] sm:$0xff]
        %v1347 = vld [vmem:[#allocation7 + $0x180] sm:$0xff]
        %v1348 = vld [vmem:[#allocation7 + $0x188] sm:$0xff]
        %v1349 = vld [vmem:[#allocation7 + $0x190] sm:$0xff]
        %v1350 = vld [vmem:[#allocation7 + $0x198] sm:$0xff]
        %v1351 = vld [vmem:[#allocation7 + $0x1a0] sm:$0xff]
        %v1352 = vld [vmem:[#allocation7 + $0x1a8] sm:$0xff]
        %v1353 = vld [vmem:[#allocation7 + $0x1b0] sm:$0xff]
        %v1354 = vld [vmem:[#allocation7 + $0x1b8] sm:$0xff]
        %v1355 = vld [vmem:[#allocation7 + $0x1c0] sm:$0xff]
        %v1356 = vld [vmem:[#allocation7 + $0x1c8] sm:$0xff]
        %v1357 = vld [vmem:[#allocation7 + $0x1d0] sm:$0xff]
        %v1358 = vld [vmem:[#allocation7 + $0x1d8] sm:$0xff]
        %v1359 = vld [vmem:[#allocation7 + $0x1e0] sm:$0xff]
        %v1360 = vld [vmem:[#allocation7 + $0x1e8] sm:$0xff]
        %v1361 = vld [vmem:[#allocation7 + $0x1f0] sm:$0xff]
        %v1362 = vld [vmem:[#allocation7 + $0x1f8] sm:$0xff]
        %v1363 = vld [vmem:[#allocation7 + $0x200] sm:$0xff]
        %v1364 = vld [vmem:[#allocation7 + $0x208] sm:$0xff]
        %v1365 = vld [vmem:[#allocation7 + $0x210] sm:$0xff]
        %v1366 = vld [vmem:[#allocation7 + $0x218] sm:$0xff]
        %v1367 = vld [vmem:[#allocation7 + $0x220] sm:$0xff]
        %v1368 = vld [vmem:[#allocation7 + $0x228] sm:$0xff]
        %v1369 = vld [vmem:[#allocation7 + $0x230] sm:$0xff]
        %v1370 = vld [vmem:[#allocation7 + $0x238] sm:$0xff]
        %v1371 = vld [vmem:[#allocation7 + $0x240] sm:$0xff]
        %v1372 = vld [vmem:[#allocation7 + $0x248] sm:$0xff]
        %v1373 = vld [vmem:[#allocation7 + $0x250] sm:$0xff]
        %v1374 = vld [vmem:[#allocation7 + $0x258] sm:$0xff]
        %v1375 = vld [vmem:[#allocation7 + $0x260] sm:$0xff]
        %v1376 = vld [vmem:[#allocation7 + $0x268] sm:$0xff]
        %v1377 = vld [vmem:[#allocation7 + $0x270] sm:$0xff]
        %v1378 = vld [vmem:[#allocation7 + $0x278] sm:$0xff]
        %v1379 = vld [vmem:[#allocation7 + $0x280] sm:$0xff]
        %v1380 = vld [vmem:[#allocation7 + $0x288] sm:$0xff]
        %v1381 = vld [vmem:[#allocation7 + $0x290] sm:$0xff]
        %v1382 = vld [vmem:[#allocation7 + $0x298] sm:$0xff]
        %v1383 = vld [vmem:[#allocation7 + $0x2a0] sm:$0xff]
        %v1384 = vld [vmem:[#allocation7 + $0x2a8] sm:$0xff]
        %v1385 = vld [vmem:[#allocation7 + $0x2b0] sm:$0xff]
        %v1386 = vld [vmem:[#allocation7 + $0x2b8] sm:$0xff]
        %v1387 = vld [vmem:[#allocation7 + $0x2c0] sm:$0xff]
        %v1388 = vld [vmem:[#allocation7 + $0x2c8] sm:$0xff]
        %v1389 = vld [vmem:[#allocation7 + $0x2d0] sm:$0xff]
        %v1390 = vld [vmem:[#allocation7 + $0x2d8] sm:$0xff]
        %v1391 = vld [vmem:[#allocation7 + $0x2e0] sm:$0xff]
        %v1392 = vld [vmem:[#allocation7 + $0x2e8] sm:$0xff]
        %v1393 = vld [vmem:[#allocation7 + $0x2f0] sm:$0xff]
        %v1394 = vld [vmem:[#allocation7 + $0x2f8] sm:$0xff]
        %v1395 = vld [vmem:[#allocation7 + $0x300] sm:$0xff]
        %v1396 = vld [vmem:[#allocation7 + $0x308] sm:$0xff]
        %v1397 = vld [vmem:[#allocation7 + $0x310] sm:$0xff]
        %v1398 = vld [vmem:[#allocation7 + $0x318] sm:$0xff]
        %v1399 = vld [vmem:[#allocation7 + $0x320] sm:$0xff]
        %v1400 = vld [vmem:[#allocation7 + $0x328] sm:$0xff]
        %v1401 = vld [vmem:[#allocation7 + $0x330] sm:$0xff]
        %v1402 = vld [vmem:[#allocation7 + $0x338] sm:$0xff]
        %v1403 = vld [vmem:[#allocation7 + $0x340] sm:$0xff]
        %v1404 = vld [vmem:[#allocation7 + $0x348] sm:$0xff]
        %v1405 = vld [vmem:[#allocation7 + $0x350] sm:$0xff]
        %v1406 = vld [vmem:[#allocation7 + $0x358] sm:$0xff]
        %v1407 = vld [vmem:[#allocation7 + $0x360] sm:$0xff]
        %v1408 = vld [vmem:[#allocation7 + $0x368] sm:$0xff]
        %v1409 = vld [vmem:[#allocation7 + $0x370] sm:$0xff]
        %v1410 = vld [vmem:[#allocation7 + $0x378] sm:$0xff]
        %v1411 = vld [vmem:[#allocation7 + $0x380] sm:$0xff]
        %v1412 = vld [vmem:[#allocation7 + $0x388] sm:$0xff]
        %v1413 = vld [vmem:[#allocation7 + $0x390] sm:$0xff]
        %v1414 = vld [vmem:[#allocation7 + $0x398] sm:$0xff]
        %v1415 = vld [vmem:[#allocation7 + $0x3a0] sm:$0xff]
        %v1416 = vld [vmem:[#allocation7 + $0x3a8] sm:$0xff]
        %v1417 = vld [vmem:[#allocation7 + $0x3b0] sm:$0xff]
        %v1418 = vld [vmem:[#allocation7 + $0x3b8] sm:$0xff]
        %v1419 = vld [vmem:[#allocation7 + $0x3c0] sm:$0xff]
        %v1420 = vld [vmem:[#allocation7 + $0x3c8] sm:$0xff]
        %v1421 = vld [vmem:[#allocation7 + $0x3d0] sm:$0xff]
        %v1422 = vld [vmem:[#allocation7 + $0x3d8] sm:$0xff]
        %v1423 = vld [vmem:[#allocation7 + $0x3e0] sm:$0xff]
        %v1424 = vld [vmem:[#allocation7 + $0x3e8] sm:$0xff]
        %v1425 = vld [vmem:[#allocation7 + $0x3f0] sm:$0xff]
        %v1426 = vld [vmem:[#allocation7 + $0x3f8] sm:$0xff]
        %v1555 = vunpack.c.l.b16 %v1299
        %v1556 = vunpack.c.h.b16 %v1299
        %v1557 = vunpack.c.l.b16 %v1300
        %v1558 = vunpack.c.h.b16 %v1300
        %v1559 = vunpack.c.l.b16 %v1301
        %v1560 = vunpack.c.h.b16 %v1301
        %v1561 = vunpack.c.l.b16 %v1302
        %v1562 = vunpack.c.h.b16 %v1302
        %v1563 = vunpack.c.l.b16 %v1303
        %v1564 = vunpack.c.h.b16 %v1303
        %v1565 = vunpack.c.l.b16 %v1304
        %v1566 = vunpack.c.h.b16 %v1304
        %v1567 = vunpack.c.l.b16 %v1305
        %v1568 = vunpack.c.h.b16 %v1305
        %v1569 = vunpack.c.l.b16 %v1306
        %v1570 = vunpack.c.h.b16 %v1306
        %v1571 = vunpack.c.l.b16 %v1307
        %v1572 = vunpack.c.h.b16 %v1307
        %v1573 = vunpack.c.l.b16 %v1308
        %v1574 = vunpack.c.h.b16 %v1308
        %v1575 = vunpack.c.l.b16 %v1309
        %v1576 = vunpack.c.h.b16 %v1309
        %v1577 = vunpack.c.l.b16 %v1310
        %v1578 = vunpack.c.h.b16 %v1310
        %v1579 = vunpack.c.l.b16 %v1311
        %v1580 = vunpack.c.h.b16 %v1311
        %v1581 = vunpack.c.l.b16 %v1312
        %v1582 = vunpack.c.h.b16 %v1312
        %v1583 = vunpack.c.l.b16 %v1313
        %v1584 = vunpack.c.h.b16 %v1313
        %v1585 = vunpack.c.l.b16 %v1314
        %v1586 = vunpack.c.h.b16 %v1314
        %v1587 = vunpack.c.l.b16 %v1315
        %v1588 = vunpack.c.h.b16 %v1315
        %v1589 = vunpack.c.l.b16 %v1316
        %v1590 = vunpack.c.h.b16 %v1316
        %v1591 = vunpack.c.l.b16 %v1317
        %v1592 = vunpack.c.h.b16 %v1317
        %v1593 = vunpack.c.l.b16 %v1318
        %v1594 = vunpack.c.h.b16 %v1318
        %v1595 = vunpack.c.l.b16 %v1319
        %v1596 = vunpack.c.h.b16 %v1319
        %v1597 = vunpack.c.l.b16 %v1320
        %v1598 = vunpack.c.h.b16 %v1320
        %v1599 = vunpack.c.l.b16 %v1321
        %v1600 = vunpack.c.h.b16 %v1321
        %v1601 = vunpack.c.l.b16 %v1322
        %v1602 = vunpack.c.h.b16 %v1322
        %v1603 = vunpack.c.l.b16 %v1323
        %v1604 = vunpack.c.h.b16 %v1323
        %v1605 = vunpack.c.l.b16 %v1324
        %v1606 = vunpack.c.h.b16 %v1324
        %v1607 = vunpack.c.l.b16 %v1325
        %v1608 = vunpack.c.h.b16 %v1325
        %v1609 = vunpack.c.l.b16 %v1326
        %v1610 = vunpack.c.h.b16 %v1326
        %v1611 = vunpack.c.l.b16 %v1327
        %v1612 = vunpack.c.h.b16 %v1327
        %v1613 = vunpack.c.l.b16 %v1328
        %v1614 = vunpack.c.h.b16 %v1328
        %v1615 = vunpack.c.l.b16 %v1329
        %v1616 = vunpack.c.h.b16 %v1329
        %v1617 = vunpack.c.l.b16 %v1330
        %v1618 = vunpack.c.h.b16 %v1330
        %v1619 = vunpack.c.l.b16 %v1331
        %v1620 = vunpack.c.h.b16 %v1331
        %v1621 = vunpack.c.l.b16 %v1332
        %v1622 = vunpack.c.h.b16 %v1332
        %v1623 = vunpack.c.l.b16 %v1333
        %v1624 = vunpack.c.h.b16 %v1333
        %v1625 = vunpack.c.l.b16 %v1334
        %v1626 = vunpack.c.h.b16 %v1334
        %v1627 = vunpack.c.l.b16 %v1335
        %v1628 = vunpack.c.h.b16 %v1335
        %v1629 = vunpack.c.l.b16 %v1336
        %v1630 = vunpack.c.h.b16 %v1336
        %v1631 = vunpack.c.l.b16 %v1337
        %v1632 = vunpack.c.h.b16 %v1337
        %v1633 = vunpack.c.l.b16 %v1338
        %v1634 = vunpack.c.h.b16 %v1338
        %v1635 = vunpack.c.l.b16 %v1339
        %v1636 = vunpack.c.h.b16 %v1339
        %v1637 = vunpack.c.l.b16 %v1340
        %v1638 = vunpack.c.h.b16 %v1340
        %v1639 = vunpack.c.l.b16 %v1341
        %v1640 = vunpack.c.h.b16 %v1341
        %v1641 = vunpack.c.l.b16 %v1342
        %v1642 = vunpack.c.h.b16 %v1342
        %v1643 = vunpack.c.l.b16 %v1343
        %v1644 = vunpack.c.h.b16 %v1343
        %v1645 = vunpack.c.l.b16 %v1344
        %v1646 = vunpack.c.h.b16 %v1344
        %v1647 = vunpack.c.l.b16 %v1345
        %v1648 = vunpack.c.h.b16 %v1345
        %v1649 = vunpack.c.l.b16 %v1346
        %v1650 = vunpack.c.h.b16 %v1346
        %v1651 = vunpack.c.l.b16 %v1347
        %v1652 = vunpack.c.h.b16 %v1347
        %v1653 = vunpack.c.l.b16 %v1348
        %v1654 = vunpack.c.h.b16 %v1348
        %v1655 = vunpack.c.l.b16 %v1349
        %v1656 = vunpack.c.h.b16 %v1349
        %v1657 = vunpack.c.l.b16 %v1350
        %v1658 = vunpack.c.h.b16 %v1350
        %v1659 = vunpack.c.l.b16 %v1351
        %v1660 = vunpack.c.h.b16 %v1351
        %v1661 = vunpack.c.l.b16 %v1352
        %v1662 = vunpack.c.h.b16 %v1352
        %v1663 = vunpack.c.l.b16 %v1353
        %v1664 = vunpack.c.h.b16 %v1353
        %v1665 = vunpack.c.l.b16 %v1354
        %v1666 = vunpack.c.h.b16 %v1354
        %v1667 = vunpack.c.l.b16 %v1355
        %v1668 = vunpack.c.h.b16 %v1355
        %v1669 = vunpack.c.l.b16 %v1356
        %v1670 = vunpack.c.h.b16 %v1356
        %v1671 = vunpack.c.l.b16 %v1357
        %v1672 = vunpack.c.h.b16 %v1357
        %v1673 = vunpack.c.l.b16 %v1358
        %v1674 = vunpack.c.h.b16 %v1358
        %v1675 = vunpack.c.l.b16 %v1359
        %v1676 = vunpack.c.h.b16 %v1359
        %v1677 = vunpack.c.l.b16 %v1360
        %v1678 = vunpack.c.h.b16 %v1360
        %v1679 = vunpack.c.l.b16 %v1361
        %v1680 = vunpack.c.h.b16 %v1361
        %v1681 = vunpack.c.l.b16 %v1362
        %v1682 = vunpack.c.h.b16 %v1362
        %v1683 = vunpack.c.l.b16 %v1363
        %v1684 = vunpack.c.h.b16 %v1363
        %v1685 = vunpack.c.l.b16 %v1364
        %v1686 = vunpack.c.h.b16 %v1364
        %v1687 = vunpack.c.l.b16 %v1365
        %v1688 = vunpack.c.h.b16 %v1365
        %v1689 = vunpack.c.l.b16 %v1366
        %v1690 = vunpack.c.h.b16 %v1366
        %v1691 = vunpack.c.l.b16 %v1367
        %v1692 = vunpack.c.h.b16 %v1367
        %v1693 = vunpack.c.l.b16 %v1368
        %v1694 = vunpack.c.h.b16 %v1368
        %v1695 = vunpack.c.l.b16 %v1369
        %v1696 = vunpack.c.h.b16 %v1369
        %v1697 = vunpack.c.l.b16 %v1370
        %v1698 = vunpack.c.h.b16 %v1370
        %v1699 = vunpack.c.l.b16 %v1371
        %v1700 = vunpack.c.h.b16 %v1371
        %v1701 = vunpack.c.l.b16 %v1372
        %v1702 = vunpack.c.h.b16 %v1372
        %v1703 = vunpack.c.l.b16 %v1373
        %v1704 = vunpack.c.h.b16 %v1373
        %v1705 = vunpack.c.l.b16 %v1374
        %v1706 = vunpack.c.h.b16 %v1374
        %v1707 = vunpack.c.l.b16 %v1375
        %v1708 = vunpack.c.h.b16 %v1375
        %v1709 = vunpack.c.l.b16 %v1376
        %v1710 = vunpack.c.h.b16 %v1376
        %v1711 = vunpack.c.l.b16 %v1377
        %v1712 = vunpack.c.h.b16 %v1377
        %v1713 = vunpack.c.l.b16 %v1378
        %v1714 = vunpack.c.h.b16 %v1378
        %v1715 = vunpack.c.l.b16 %v1379
        %v1716 = vunpack.c.h.b16 %v1379
        %v1717 = vunpack.c.l.b16 %v1380
        %v1718 = vunpack.c.h.b16 %v1380
        %v1719 = vunpack.c.l.b16 %v1381
        %v1720 = vunpack.c.h.b16 %v1381
        %v1721 = vunpack.c.l.b16 %v1382
        %v1722 = vunpack.c.h.b16 %v1382
        %v1723 = vunpack.c.l.b16 %v1383
        %v1724 = vunpack.c.h.b16 %v1383
        %v1725 = vunpack.c.l.b16 %v1384
        %v1726 = vunpack.c.h.b16 %v1384
        %v1727 = vunpack.c.l.b16 %v1385
        %v1728 = vunpack.c.h.b16 %v1385
        %v1729 = vunpack.c.l.b16 %v1386
        %v1730 = vunpack.c.h.b16 %v1386
        %v1731 = vunpack.c.l.b16 %v1387
        %v1732 = vunpack.c.h.b16 %v1387
        %v1733 = vunpack.c.l.b16 %v1388
        %v1734 = vunpack.c.h.b16 %v1388
        %v1735 = vunpack.c.l.b16 %v1389
        %v1736 = vunpack.c.h.b16 %v1389
        %v1737 = vunpack.c.l.b16 %v1390
        %v1738 = vunpack.c.h.b16 %v1390
        %v1739 = vunpack.c.l.b16 %v1391
        %v1740 = vunpack.c.h.b16 %v1391
        %v1741 = vunpack.c.l.b16 %v1392
        %v1742 = vunpack.c.h.b16 %v1392
        %v1743 = vunpack.c.l.b16 %v1393
        %v1744 = vunpack.c.h.b16 %v1393
        %v1745 = vunpack.c.l.b16 %v1394
        %v1746 = vunpack.c.h.b16 %v1394
        %v1747 = vunpack.c.l.b16 %v1395
        %v1748 = vunpack.c.h.b16 %v1395
        %v1749 = vunpack.c.l.b16 %v1396
        %v1750 = vunpack.c.h.b16 %v1396
        %v1751 = vunpack.c.l.b16 %v1397
        %v1752 = vunpack.c.h.b16 %v1397
        %v1753 = vunpack.c.l.b16 %v1398
        %v1754 = vunpack.c.h.b16 %v1398
        %v1755 = vunpack.c.l.b16 %v1399
        %v1756 = vunpack.c.h.b16 %v1399
        %v1757 = vunpack.c.l.b16 %v1400
        %v1758 = vunpack.c.h.b16 %v1400
        %v1759 = vunpack.c.l.b16 %v1401
        %v1760 = vunpack.c.h.b16 %v1401
        %v1761 = vunpack.c.l.b16 %v1402
        %v1762 = vunpack.c.h.b16 %v1402
        %v1763 = vunpack.c.l.b16 %v1403
        %v1764 = vunpack.c.h.b16 %v1403
        %v1765 = vunpack.c.l.b16 %v1404
        %v1766 = vunpack.c.h.b16 %v1404
        %v1767 = vunpack.c.l.b16 %v1405
        %v1768 = vunpack.c.h.b16 %v1405
        %v1769 = vunpack.c.l.b16 %v1406
        %v1770 = vunpack.c.h.b16 %v1406
        %v1771 = vunpack.c.l.b16 %v1407
        %v1772 = vunpack.c.h.b16 %v1407
        %v1773 = vunpack.c.l.b16 %v1408
        %v1774 = vunpack.c.h.b16 %v1408
        %v1775 = vunpack.c.l.b16 %v1409
        %v1776 = vunpack.c.h.b16 %v1409
        %v1777 = vunpack.c.l.b16 %v1410
        %v1778 = vunpack.c.h.b16 %v1410
        %v1779 = vunpack.c.l.b16 %v1411
        %v1780 = vunpack.c.h.b16 %v1411
        %v1781 = vunpack.c.l.b16 %v1412
        %v1782 = vunpack.c.h.b16 %v1412
        %v1783 = vunpack.c.l.b16 %v1413
        %v1784 = vunpack.c.h.b16 %v1413
        %v1785 = vunpack.c.l.b16 %v1414
        %v1786 = vunpack.c.h.b16 %v1414
        %v1787 = vunpack.c.l.b16 %v1415
        %v1788 = vunpack.c.h.b16 %v1415
        %v1789 = vunpack.c.l.b16 %v1416
        %v1790 = vunpack.c.h.b16 %v1416
        %v1791 = vunpack.c.l.b16 %v1417
        %v1792 = vunpack.c.h.b16 %v1417
        %v1793 = vunpack.c.l.b16 %v1418
        %v1794 = vunpack.c.h.b16 %v1418
        %v1795 = vunpack.c.l.b16 %v1419
        %v1796 = vunpack.c.h.b16 %v1419
        %v1797 = vunpack.c.l.b16 %v1420
        %v1798 = vunpack.c.h.b16 %v1420
        %v1799 = vunpack.c.l.b16 %v1421
        %v1800 = vunpack.c.h.b16 %v1421
        %v1801 = vunpack.c.l.b16 %v1422
        %v1802 = vunpack.c.h.b16 %v1422
        %v1803 = vunpack.c.l.b16 %v1423
        %v1804 = vunpack.c.h.b16 %v1423
        %v1805 = vunpack.c.l.b16 %v1424
        %v1806 = vunpack.c.h.b16 %v1424
        %v1807 = vunpack.c.l.b16 %v1425
        %v1808 = vunpack.c.h.b16 %v1425
        %v1809 = vunpack.c.l.b16 %v1426
        %v1810 = vunpack.c.h.b16 %v1426
        %v1811 = vpack.c.b16 %v1557, %v1555
        %v1812 = vpack.c.b16 %v1558, %v1556
        %v1813 = vpack.c.b16 %v1561, %v1559
        %v1814 = vpack.c.b16 %v1562, %v1560
        %v1815 = vpack.c.b16 %v1565, %v1563
        %v1816 = vpack.c.b16 %v1566, %v1564
        %v1817 = vpack.c.b16 %v1569, %v1567
        %v1818 = vpack.c.b16 %v1570, %v1568
        %v1819 = vpack.c.b16 %v1573, %v1571
        %v1820 = vpack.c.b16 %v1574, %v1572
        %v1821 = vpack.c.b16 %v1577, %v1575
        %v1822 = vpack.c.b16 %v1578, %v1576
        %v1823 = vpack.c.b16 %v1581, %v1579
        %v1824 = vpack.c.b16 %v1582, %v1580
        %v1825 = vpack.c.b16 %v1585, %v1583
        %v1826 = vpack.c.b16 %v1586, %v1584
        %v1827 = vpack.c.b16 %v1589, %v1587
        %v1828 = vpack.c.b16 %v1590, %v1588
        %v1829 = vpack.c.b16 %v1593, %v1591
        %v1830 = vpack.c.b16 %v1594, %v1592
        %v1831 = vpack.c.b16 %v1597, %v1595
        %v1832 = vpack.c.b16 %v1598, %v1596
        %v1833 = vpack.c.b16 %v1601, %v1599
        %v1834 = vpack.c.b16 %v1602, %v1600
        %v1835 = vpack.c.b16 %v1605, %v1603
        %v1836 = vpack.c.b16 %v1606, %v1604
        %v1837 = vpack.c.b16 %v1609, %v1607
        %v1838 = vpack.c.b16 %v1610, %v1608
        %v1839 = vpack.c.b16 %v1613, %v1611
        %v1840 = vpack.c.b16 %v1614, %v1612
        %v1841 = vpack.c.b16 %v1617, %v1615
        %v1842 = vpack.c.b16 %v1618, %v1616
        %v1843 = vpack.c.b16 %v1621, %v1619
        %v1844 = vpack.c.b16 %v1622, %v1620
        %v1845 = vpack.c.b16 %v1625, %v1623
        %v1846 = vpack.c.b16 %v1626, %v1624
        %v1847 = vpack.c.b16 %v1629, %v1627
        %v1848 = vpack.c.b16 %v1630, %v1628
        %v1849 = vpack.c.b16 %v1633, %v1631
        %v1850 = vpack.c.b16 %v1634, %v1632
        %v1851 = vpack.c.b16 %v1637, %v1635
        %v1852 = vpack.c.b16 %v1638, %v1636
        %v1853 = vpack.c.b16 %v1641, %v1639
        %v1854 = vpack.c.b16 %v1642, %v1640
        %v1855 = vpack.c.b16 %v1645, %v1643
        %v1856 = vpack.c.b16 %v1646, %v1644
        %v1857 = vpack.c.b16 %v1649, %v1647
        %v1858 = vpack.c.b16 %v1650, %v1648
        %v1859 = vpack.c.b16 %v1653, %v1651
        %v1860 = vpack.c.b16 %v1654, %v1652
        %v1861 = vpack.c.b16 %v1657, %v1655
        %v1862 = vpack.c.b16 %v1658, %v1656
        %v1863 = vpack.c.b16 %v1661, %v1659
        %v1864 = vpack.c.b16 %v1662, %v1660
        %v1865 = vpack.c.b16 %v1665, %v1663
        %v1866 = vpack.c.b16 %v1666, %v1664
        %v1867 = vpack.c.b16 %v1669, %v1667
        %v1868 = vpack.c.b16 %v1670, %v1668
        %v1869 = vpack.c.b16 %v1673, %v1671
        %v1870 = vpack.c.b16 %v1674, %v1672
        %v1871 = vpack.c.b16 %v1677, %v1675
        %v1872 = vpack.c.b16 %v1678, %v1676
        %v1873 = vpack.c.b16 %v1681, %v1679
        %v1874 = vpack.c.b16 %v1682, %v1680
        %v1875 = vpack.c.b16 %v1685, %v1683
        %v1876 = vpack.c.b16 %v1686, %v1684
        %v1877 = vpack.c.b16 %v1689, %v1687
        %v1878 = vpack.c.b16 %v1690, %v1688
        %v1879 = vpack.c.b16 %v1693, %v1691
        %v1880 = vpack.c.b16 %v1694, %v1692
        %v1881 = vpack.c.b16 %v1697, %v1695
        %v1882 = vpack.c.b16 %v1698, %v1696
        %v1883 = vpack.c.b16 %v1701, %v1699
        %v1884 = vpack.c.b16 %v1702, %v1700
        %v1885 = vpack.c.b16 %v1705, %v1703
        %v1886 = vpack.c.b16 %v1706, %v1704
        %v1887 = vpack.c.b16 %v1709, %v1707
        %v1888 = vpack.c.b16 %v1710, %v1708
        %v1889 = vpack.c.b16 %v1713, %v1711
        %v1890 = vpack.c.b16 %v1714, %v1712
        %v1891 = vpack.c.b16 %v1717, %v1715
        %v1892 = vpack.c.b16 %v1718, %v1716
        %v1893 = vpack.c.b16 %v1721, %v1719
        %v1894 = vpack.c.b16 %v1722, %v1720
        %v1895 = vpack.c.b16 %v1725, %v1723
        %v1896 = vpack.c.b16 %v1726, %v1724
        %v1897 = vpack.c.b16 %v1729, %v1727
        %v1898 = vpack.c.b16 %v1730, %v1728
        %v1899 = vpack.c.b16 %v1733, %v1731
        %v1900 = vpack.c.b16 %v1734, %v1732
        %v1901 = vpack.c.b16 %v1737, %v1735
        %v1902 = vpack.c.b16 %v1738, %v1736
        %v1903 = vpack.c.b16 %v1741, %v1739
        %v1904 = vpack.c.b16 %v1742, %v1740
        %v1905 = vpack.c.b16 %v1745, %v1743
        %v1906 = vpack.c.b16 %v1746, %v1744
        %v1907 = vpack.c.b16 %v1749, %v1747
        %v1908 = vpack.c.b16 %v1750, %v1748
        %v1909 = vpack.c.b16 %v1753, %v1751
        %v1910 = vpack.c.b16 %v1754, %v1752
        %v1911 = vpack.c.b16 %v1757, %v1755
        %v1912 = vpack.c.b16 %v1758, %v1756
        %v1913 = vpack.c.b16 %v1761, %v1759
        %v1914 = vpack.c.b16 %v1762, %v1760
        %v1915 = vpack.c.b16 %v1765, %v1763
        %v1916 = vpack.c.b16 %v1766, %v1764
        %v1917 = vpack.c.b16 %v1769, %v1767
        %v1918 = vpack.c.b16 %v1770, %v1768
        %v1919 = vpack.c.b16 %v1773, %v1771
        %v1920 = vpack.c.b16 %v1774, %v1772
        %v1921 = vpack.c.b16 %v1777, %v1775
        %v1922 = vpack.c.b16 %v1778, %v1776
        %v1923 = vpack.c.b16 %v1781, %v1779
        %v1924 = vpack.c.b16 %v1782, %v1780
        %v1925 = vpack.c.b16 %v1785, %v1783
        %v1926 = vpack.c.b16 %v1786, %v1784
        %v1927 = vpack.c.b16 %v1789, %v1787
        %v1928 = vpack.c.b16 %v1790, %v1788
        %v1929 = vpack.c.b16 %v1793, %v1791
        %v1930 = vpack.c.b16 %v1794, %v1792
        %v1931 = vpack.c.b16 %v1797, %v1795
        %v1932 = vpack.c.b16 %v1798, %v1796
        %v1933 = vpack.c.b16 %v1801, %v1799
        %v1934 = vpack.c.b16 %v1802, %v1800
        %v1935 = vpack.c.b16 %v1805, %v1803
        %v1936 = vpack.c.b16 %v1806, %v1804
        %v1937 = vpack.c.b16 %v1809, %v1807
        %v1938 = vpack.c.b16 %v1810, %v1808
        %2067 = vmatprep.subr.bf16.mxu0 %v1812
        %2068 = vmatpush1.bf16.msra.mxu0 %v1811
        %2069 = vmatprep.subr.bf16.mxu0 %v1814
        %2070 = vmatpush1.bf16.msra.mxu0 %v1813
        %2071 = vmatprep.subr.bf16.mxu0 %v1816
        %2072 = vmatpush1.bf16.msra.mxu0 %v1815
        %2073 = vmatprep.subr.bf16.mxu0 %v1818
        %2074 = vmatpush1.bf16.msra.mxu0 %v1817
        %2075 = vmatprep.subr.bf16.mxu0 %v1820
        %2076 = vmatpush1.bf16.msra.mxu0 %v1819
        %2077 = vmatprep.subr.bf16.mxu0 %v1822
        %2078 = vmatpush1.bf16.msra.mxu0 %v1821
        %2079 = vmatprep.subr.bf16.mxu0 %v1824
        %2080 = vmatpush1.bf16.msra.mxu0 %v1823
        %2081 = vmatprep.subr.bf16.mxu0 %v1826
        %2082 = vmatpush1.bf16.msra.mxu0 %v1825
        %2083 = vmatprep.subr.bf16.mxu0 %v1828
        %2084 = vmatpush1.bf16.msra.mxu0 %v1827
        %2085 = vmatprep.subr.bf16.mxu0 %v1830
        %2086 = vmatpush1.bf16.msra.mxu0 %v1829
        %2087 = vmatprep.subr.bf16.mxu0 %v1832
        %2088 = vmatpush1.bf16.msra.mxu0 %v1831
        %2089 = vmatprep.subr.bf16.mxu0 %v1834
        %2090 = vmatpush1.bf16.msra.mxu0 %v1833
        %2091 = vmatprep.subr.bf16.mxu0 %v1836
        %2092 = vmatpush1.bf16.msra.mxu0 %v1835
        %2093 = vmatprep.subr.bf16.mxu0 %v1838
        %2094 = vmatpush1.bf16.msra.mxu0 %v1837
        %2095 = vmatprep.subr.bf16.mxu0 %v1840
        %2096 = vmatpush1.bf16.msra.mxu0 %v1839
        %2097 = vmatprep.subr.bf16.mxu0 %v1842
        %2098 = vmatpush1.bf16.msra.mxu0 %v1841
        %2099 = vmatprep.mubr.bf16.mxu0 %v1292
        %2100 = vmatmul.mubr.bf16.gmra.mrb[0].mxu0 %v1291
        %v2101 = vpop.f32.mrb[0].mxu0
        %v2102 = vadd.f32 0.0, %v2101
        %v2103 = vpop.f32.mrb[0].mxu0
        %v2104 = vadd.f32 0.0, %v2103
        %v2105 = vpop.f32.mrb[0].mxu0
        %v2106 = vpop.f32.mrb[0].mxu0
        %2107 = vdwg.mxu0
        %2108 = vmatprep.subr.bf16.mxu0 %v1844
        %2109 = vmatpush1.bf16.msra.mxu0 %v1843
        %2110 = vmatprep.subr.bf16.mxu0 %v1846
        %2111 = vmatpush1.bf16.msra.mxu0 %v1845
        %2112 = vmatprep.subr.bf16.mxu0 %v1848
        %2113 = vmatpush1.bf16.msra.mxu0 %v1847
        %2114 = vmatprep.subr.bf16.mxu0 %v1850
        %2115 = vmatpush1.bf16.msra.mxu0 %v1849
        %2116 = vmatprep.subr.bf16.mxu0 %v1852
        %2117 = vmatpush1.bf16.msra.mxu0 %v1851
        %2118 = vmatprep.subr.bf16.mxu0 %v1854
        %2119 = vmatpush1.bf16.msra.mxu0 %v1853
        %2120 = vmatprep.subr.bf16.mxu0 %v1856
        %2121 = vmatpush1.bf16.msra.mxu0 %v1855
        %2122 = vmatprep.subr.bf16.mxu0 %v1858
        %2123 = vmatpush1.bf16.msra.mxu0 %v1857
        %2124 = vmatprep.subr.bf16.mxu0 %v1860
        %2125 = vmatpush1.bf16.msra.mxu0 %v1859
        %2126 = vmatprep.subr.bf16.mxu0 %v1862
        %2127 = vmatpush1.bf16.msra.mxu0 %v1861
        %2128 = vmatprep.subr.bf16.mxu0 %v1864
        %2129 = vmatpush1.bf16.msra.mxu0 %v1863
        %2130 = vmatprep.subr.bf16.mxu0 %v1866
        %2131 = vmatpush1.bf16.msra.mxu0 %v1865
        %2132 = vmatprep.subr.bf16.mxu0 %v1868
        %2133 = vmatpush1.bf16.msra.mxu0 %v1867
        %2134 = vmatprep.subr.bf16.mxu0 %v1870
        %2135 = vmatpush1.bf16.msra.mxu0 %v1869
        %2136 = vmatprep.subr.bf16.mxu0 %v1872
        %2137 = vmatpush1.bf16.msra.mxu0 %v1871
        %2138 = vmatprep.subr.bf16.mxu0 %v1874
        %2139 = vmatpush1.bf16.msra.mxu0 %v1873
        %2140 = vmatprep.mubr.bf16.mxu0 %v1294
        %2141 = vmatmul.mubr.bf16.gmra.mrb[0].mxu0 %v1293
        %v2142 = vpop.f32.mrb[0].mxu0
        %v2143 = vadd.f32 %v2102, %v2142
        %v2144 = vpop.f32.mrb[0].mxu0
        %v2145 = vadd.f32 %v2104, %v2144
        %v2146 = vpop.f32.mrb[0].mxu0
        %v2147 = vpop.f32.mrb[0].mxu0
        %2148 = vdwg.mxu0
        %2149 = vmatprep.subr.bf16.mxu0 %v1876
        %2150 = vmatpush1.bf16.msra.mxu0 %v1875
        %2151 = vmatprep.subr.bf16.mxu0 %v1878
        %2152 = vmatpush1.bf16.msra.mxu0 %v1877
        %2153 = vmatprep.subr.bf16.mxu0 %v1880
        %2154 = vmatpush1.bf16.msra.mxu0 %v1879
        %2155 = vmatprep.subr.bf16.mxu0 %v1882
        %2156 = vmatpush1.bf16.msra.mxu0 %v1881
        %2157 = vmatprep.subr.bf16.mxu0 %v1884
        %2158 = vmatpush1.bf16.msra.mxu0 %v1883
        %2159 = vmatprep.subr.bf16.mxu0 %v1886
        %2160 = vmatpush1.bf16.msra.mxu0 %v1885
        %2161 = vmatprep.subr.bf16.mxu0 %v1888
        %2162 = vmatpush1.bf16.msra.mxu0 %v1887
        %2163 = vmatprep.subr.bf16.mxu0 %v1890
        %2164 = vmatpush1.bf16.msra.mxu0 %v1889
        %2165 = vmatprep.subr.bf16.mxu0 %v1892
        %2166 = vmatpush1.bf16.msra.mxu0 %v1891
        %2167 = vmatprep.subr.bf16.mxu0 %v1894
        %2168 = vmatpush1.bf16.msra.mxu0 %v1893
        %2169 = vmatprep.subr.bf16.mxu0 %v1896
        %2170 = vmatpush1.bf16.msra.mxu0 %v1895
        %2171 = vmatprep.subr.bf16.mxu0 %v1898
        %2172 = vmatpush1.bf16.msra.mxu0 %v1897
        %2173 = vmatprep.subr.bf16.mxu0 %v1900
        %2174 = vmatpush1.bf16.msra.mxu0 %v1899
        %2175 = vmatprep.subr.bf16.mxu0 %v1902
        %2176 = vmatpush1.bf16.msra.mxu0 %v1901
        %2177 = vmatprep.subr.bf16.mxu0 %v1904
        %2178 = vmatpush1.bf16.msra.mxu0 %v1903
        %2179 = vmatprep.subr.bf16.mxu0 %v1906
        %2180 = vmatpush1.bf16.msra.mxu0 %v1905
        %2181 = vmatprep.mubr.bf16.mxu0 %v1296
        %2182 = vmatmul.mubr.bf16.gmra.mrb[0].mxu0 %v1295
        %v2183 = vpop.f32.mrb[0].mxu0
        %v2184 = vadd.f32 %v2143, %v2183
        %v2185 = vpop.f32.mrb[0].mxu0
        %v2186 = vadd.f32 %v2145, %v2185
        %v2187 = vpop.f32.mrb[0].mxu0
        %v2188 = vpop.f32.mrb[0].mxu0
        %2189 = vdwg.mxu0
        %2190 = vmatprep.subr.bf16.mxu0 %v1908
        %2191 = vmatpush1.bf16.msra.mxu0 %v1907
        %2192 = vmatprep.subr.bf16.mxu0 %v1910
        %2193 = vmatpush1.bf16.msra.mxu0 %v1909
        %2194 = vmatprep.subr.bf16.mxu0 %v1912
        %2195 = vmatpush1.bf16.msra.mxu0 %v1911
        %2196 = vmatprep.subr.bf16.mxu0 %v1914
        %2197 = vmatpush1.bf16.msra.mxu0 %v1913
        %2198 = vmatprep.subr.bf16.mxu0 %v1916
        %2199 = vmatpush1.bf16.msra.mxu0 %v1915
        %2200 = vmatprep.subr.bf16.mxu0 %v1918
        %2201 = vmatpush1.bf16.msra.mxu0 %v1917
        %2202 = vmatprep.subr.bf16.mxu0 %v1920
        %2203 = vmatpush1.bf16.msra.mxu0 %v1919
        %2204 = vmatprep.subr.bf16.mxu0 %v1922
        %2205 = vmatpush1.bf16.msra.mxu0 %v1921
        %2206 = vmatprep.subr.bf16.mxu0 %v1924
        %2207 = vmatpush1.bf16.msra.mxu0 %v1923
        %2208 = vmatprep.subr.bf16.mxu0 %v1926
        %2209 = vmatpush1.bf16.msra.mxu0 %v1925
        %2210 = vmatprep.subr.bf16.mxu0 %v1928
        %2211 = vmatpush1.bf16.msra.mxu0 %v1927
        %2212 = vmatprep.subr.bf16.mxu0 %v1930
        %2213 = vmatpush1.bf16.msra.mxu0 %v1929
        %2214 = vmatprep.subr.bf16.mxu0 %v1932
        %2215 = vmatpush1.bf16.msra.mxu0 %v1931
        %2216 = vmatprep.subr.bf16.mxu0 %v1934
        %2217 = vmatpush1.bf16.msra.mxu0 %v1933
        %2218 = vmatprep.subr.bf16.mxu0 %v1936
        %2219 = vmatpush1.bf16.msra.mxu0 %v1935
        %2220 = vmatprep.subr.bf16.mxu0 %v1938
        %2221 = vmatpush1.bf16.msra.mxu0 %v1937
        %2222 = vmatprep.mubr.bf16.mxu0 %v1298
        %2223 = vmatmul.mubr.bf16.gmra.mrb[0].mxu0 %v1297
        %v2224 = vpop.f32.mrb[0].mxu0
        %v2225 = vadd.f32 %v2184, %v2224
        %v2226 = vpop.f32.mrb[0].mxu0
        %v2227 = vadd.f32 %v2186, %v2226
        %v2228 = vpop.f32.mrb[0].mxu0
        %v2229 = vpop.f32.mrb[0].mxu0
        %2230 = vdwg.mxu0
        %2231 = vst [vmem:[%s269] sm:$0xff] %v2225
        %2232 = vst [vmem:[%s269 + $0x8] sm:$0xff] %v2227
        %s2233 = sand.u32 %s141, 1
        %s2234 = scalar_lea.sflag [#allocation4], %s2233
        %s2235 = sand.u32 %s141, 1
        %s2236 = smul.addr %s2235, 16
        %s2237 = scalar_lea.vmem [#allocation8], %s2236
        // Predicated region
        $region53: #{tpu_custom_call.1} parent=39 // pred_check
          %p2238 = pneg %p151
        $region54: #{tpu_custom_call.1} parent=39 // pred_check_branch
          %2240 = sbr.rel (%p2238) target = $region56
        $region55: #{tpu_custom_call.1} parent=39 // pred_region
          %s2242 = ssub.s32 256, 256
          %2243 = vsyncadd %s2234, %s2242
          %s2244 = smul.addr %s23, 2
          %s2245 = smul.addr %s2244, 128
          %s2246 = scalar_lea.hbm %s5, %s2245
          %s2248 = sshll.u32 %s2237, 4
          %s2249 = int_to_ptr.vmem [resolvable:$true] %s2248
          %2251 = dma.vmem_to_hbm [thread:$0]  %s2249, 256, %s2246, %s2234
        $region56: #{tpu_custom_call.1} parent=39 // pred_fallthru
          _
      $region40: #{tpu_custom_call.1} parent=5 // pred_fallthru
        _
      %p2252 = scmp.le.s32.totalorder 2, %s18
      // Predicated region
      $region57: #{tpu_custom_call.1} parent=5 // pred_check
        %p2253 = pneg %p2252
      $region58: #{tpu_custom_call.1} parent=5 // pred_check_branch
        %2255 = sbr.rel (%p2253) target = $region60
      $region59: #{tpu_custom_call.1} parent=5 // pred_region
        %s2256 = ssub.s32 %s18, 2
        // Predicated region
        $region61: #{tpu_custom_call.1} parent=59 // pred_check
          %p2257 = pneg %p157
        $region62: #{tpu_custom_call.1} parent=59 // pred_check_branch
          %2259 = sbr.rel (%p2257) target = $region64
        $region63: #{tpu_custom_call.1} parent=59 // pred_region
          %s2260 = sand.u32 %s142, 1
          %s2261 = scalar_lea.sflag [#allocation4], %s2260
          %s2262 = sand.u32 %s142, 1
          %s2263 = smul.addr %s2262, 16
          %s2264 = scalar_lea.vmem [#allocation8], %s2263
          %2265 = dma.done %s2261, 256
        $region64: #{tpu_custom_call.1} parent=59 // pred_fallthru
          _
      $region60: #{tpu_custom_call.1} parent=5 // pred_fallthru
        _
    $region6: #{tpu_custom_call.1} parent=1 // loop_footer
      %s22 = sadd.s32 1, %s18
    $region7: #{tpu_custom_call.1} parent=1 // loop_footer_branch
      %17 = sbr.rel target = $region3
    $region8: #{tpu_custom_call.1} parent=1 // loop_exit
      _
    %2266 = vsyncpa [#allocation3], 1
    %s2267 = scalar_lea.sflag [#allocation3], 1
    %2268 = vsyncpa %s2267, 1
    %2269 = vsyncpa [#allocation6], 1
    %2270 = vsyncpa [#allocation4], 1
    %s2271 = scalar_lea.sflag [#allocation4], 1
    %2272 = vsyncpa %s2271, 1

</llo_original>
